<compile_context>
chip_gen: v5e
topology: v5e:2x2
jax: 0.10.0
libtpu: 0.0.40
codegen_flags: <defaults>
</compile_context>

<pallas_src>
import functools

import numpy as np
import jax
import jax.numpy as jnp
from jax.experimental import pallas as pl
from jax.experimental.pallas import tpu as pltpu

LN_EPS = 1e-5
MASK_FILL = -1e9          # value used for masked attention scores
NEG_INIT = -1e30          # online-softmax running-max init

SYMBOL2ID = {"_pad_": 0, "_bos_": 1, "_eos_": 2, "_unk_": 3,
             "_sep_": 4, "_cls_": 5, "_mask_": 6}
PAD = SYMBOL2ID["_pad_"]
BOS = SYMBOL2ID["_bos_"]


def _round_up(x, m):
    return ((x + m - 1) // m) * m


def _pick_tile(dim, preferred, align):
    """Largest tile <= preferred that divides dim; full-dim block if dim % align != 0."""
    if dim % align != 0:
        return dim                      # full-dim block is always legal
    t = min(preferred, dim)
    t = max(align, (t // align) * align)
    while dim % t != 0:
        t -= align
    return t


def _pick_kv_tile(L, preferred):
    """kv tile feeds the (1,1,tk) pad-mask block: multiple of 128 or the full length."""
    if L % 128 != 0:
        return L
    t = max(128, (min(preferred, L) // 128) * 128)
    while L % t != 0:
        t -= 128
    return t


@functools.lru_cache(maxsize=1)
def _vmem_limit():
    """Generation-aware VMEM cap: half of physical, at most 100 MiB."""
    try:
        cap = pltpu.get_tpu_info().vmem_capacity_bytes
    except Exception:
        cap = 128 * 1024 * 1024
    return int(min(cap // 2, 100 * 1024 * 1024))


# --------------------------------------------------------------------------
# Kernel 1: tiled matmul + bias (+ optional fused residual), K-accumulating
#           directly into the resident f32 output block.
# --------------------------------------------------------------------------
def _matmul_kernel(x_ref, w_ref, b_ref, *refs, has_residual):
    if has_residual:
        r_ref, o_ref = refs
    else:
        (o_ref,) = refs

    @pl.when(pl.program_id(2) == 0)
    def _():
        if has_residual:
            o_ref[...] = r_ref[...] + b_ref[...]
        else:
            o_ref[...] = jnp.broadcast_to(b_ref[...], o_ref.shape).astype(o_ref.dtype)

    x = x_ref[...]
    if x.dtype != jnp.bfloat16:
        x = x.astype(jnp.bfloat16)
    w = w_ref[...]
    if w.dtype != jnp.bfloat16:
        w = w.astype(jnp.bfloat16)
    o_ref[...] += jnp.dot(x, w, preferred_element_type=jnp.float32)


def pallas_matmul_bias(x, w, b=None, residual=None, tm=512, tn=512, tk=512):
    M, K = x.shape
    N = w.shape[1]
    tm = _pick_tile(M, tm, 8)
    tn = _pick_tile(N, tn, 128)
    tk = _pick_tile(K, tk, 128)
    bias = (jnp.zeros((1, N), jnp.float32) if b is None
            else b.reshape(1, N).astype(jnp.float32))

    in_specs = [
        pl.BlockSpec((tm, tk), lambda i, j, k: (i, k)),
        pl.BlockSpec((tk, tn), lambda i, j, k: (k, j)),
        pl.BlockSpec((1, tn), lambda i, j, k: (0, j)),
    ]
    args = [x, w, bias]
    if residual is not None:
        in_specs.append(pl.BlockSpec((tm, tn), lambda i, j, k: (i, j)))
        args.append(residual)

    return pl.pallas_call(
        functools.partial(_matmul_kernel, has_residual=residual is not None),
        out_shape=jax.ShapeDtypeStruct((M, N), jnp.float32),
        grid=(M // tm, N // tn, K // tk),
        in_specs=in_specs,
        out_specs=pl.BlockSpec((tm, tn), lambda i, j, k: (i, j)),
        compiler_params=pltpu.CompilerParams(
            dimension_semantics=("parallel", "parallel", "arbitrary"),
            vmem_limit_bytes=_vmem_limit()),
    )(*args)


# --------------------------------------------------------------------------
# Kernel 2: fused LayerNorm + (fused QKV) projection.
#           LN computed once per row tile into a bf16 scratch at j == 0.
# --------------------------------------------------------------------------
def _ln_matmul_kernel(x_ref, g_ref, b_ref, w_ref, o_ref, ln_ref, *, eps):
    # NOTE: relies on the sequential (i outer, j inner) grid order; j is "arbitrary".
    @pl.when(pl.program_id(1) == 0)
    def _():
        x = x_ref[...]
        mu = jnp.mean(x, axis=-1, keepdims=True)
        var = jnp.mean((x - mu) * (x - mu), axis=-1, keepdims=True)
        xn = (x - mu) * jax.lax.rsqrt(var + eps) * g_ref[...] + b_ref[...]
        ln_ref[...] = xn.astype(jnp.bfloat16)

    o_ref[...] = jnp.dot(ln_ref[...], w_ref[...],
                         preferred_element_type=jnp.float32).astype(o_ref.dtype)


def pallas_ln_matmul(x, g, b, w, out_dtype=jnp.bfloat16, tm=256, tn=512):
    # TODO(synk): K (= d_model) is kept resident per tile; add a K grid axis for very large d_model.
    M, D = x.shape
    N = w.shape[1]
    tm = _pick_tile(M, tm, 8)
    tn = _pick_tile(N, tn, 128)
    return pl.pallas_call(
        functools.partial(_ln_matmul_kernel, eps=LN_EPS),
        out_shape=jax.ShapeDtypeStruct((M, N), out_dtype),
        grid=(M // tm, N // tn),
        in_specs=[
            pl.BlockSpec((tm, D), lambda i, j: (i, 0)),
            pl.BlockSpec((1, D), lambda i, j: (0, 0)),
            pl.BlockSpec((1, D), lambda i, j: (0, 0)),
            pl.BlockSpec((D, tn), lambda i, j: (0, j)),
        ],
        out_specs=pl.BlockSpec((tm, tn), lambda i, j: (i, j)),
        scratch_shapes=[pltpu.VMEM((tm, D), jnp.bfloat16)],
        compiler_params=pltpu.CompilerParams(
            dimension_semantics=("parallel", "arbitrary"),
            vmem_limit_bytes=_vmem_limit()),
    )(x, g.reshape(1, D), b.reshape(1, D), w)


# --------------------------------------------------------------------------
# Kernel 3: fused pre-norm FFN sublayer: out = x + relu(LN(x)@W1 + b1)@W2 + b2
#           (d_ff is the reduction grid axis; accumulate into the f32 output block)
# --------------------------------------------------------------------------
def _ffn_kernel(h_ref, g_ref, be_ref, w1_ref, b1_ref, w2_ref, b2_ref, o_ref,
                ln_ref, *, eps):
    @pl.when(pl.program_id(1) == 0)
    def _():
        x = h_ref[...]
        mu = jnp.mean(x, axis=-1, keepdims=True)
        var = jnp.mean((x - mu) * (x - mu), axis=-1, keepdims=True)
        ln_ref[...] = ((x - mu) * jax.lax.rsqrt(var + eps) * g_ref[...]
                       + be_ref[...]).astype(jnp.bfloat16)
        o_ref[...] = x + b2_ref[...]              # residual + output bias added once

    hid = jnp.dot(ln_ref[...], w1_ref[...],
                  preferred_element_type=jnp.float32) + b1_ref[...]
    hid = jnp.maximum(hid, 0.0)                   # activation='relu'
    o_ref[...] += jnp.dot(hid.astype(jnp.bfloat16), w2_ref[...],
                          preferred_element_type=jnp.float32)


def pallas_ffn(h, g, b, w1, b1, w2, b2, tm=128, tff=512):
    M, D = h.shape
    F = w1.shape[1]                               # already padded to a 128 multiple
    tm = _pick_tile(M, tm, 8)
    tff = _pick_tile(F, tff, 128)
    return pl.pallas_call(
        functools.partial(_ffn_kernel, eps=LN_EPS),
        out_shape=jax.ShapeDtypeStruct((M, D), jnp.float32),
        grid=(M // tm, F // tff),
        in_specs=[
            pl.BlockSpec((tm, D), lambda i, j: (i, 0)),
            pl.BlockSpec((1, D), lambda i, j: (0, 0)),
            pl.BlockSpec((1, D), lambda i, j: (0, 0)),
            pl.BlockSpec((D, tff), lambda i, j: (0, j)),
            pl.BlockSpec((1, tff), lambda i, j: (0, j)),
            pl.BlockSpec((tff, D), lambda i, j: (j, 0)),
            pl.BlockSpec((1, D), lambda i, j: (0, 0)),
        ],
        out_specs=pl.BlockSpec((tm, D), lambda i, j: (i, 0)),
        scratch_shapes=[pltpu.VMEM((tm, D), jnp.bfloat16)],
        compiler_params=pltpu.CompilerParams(
            dimension_semantics=("parallel", "arbitrary"),
            vmem_limit_bytes=_vmem_limit()),
    )(h, g.reshape(1, D), b.reshape(1, D), w1, b1.reshape(1, F), w2, b2.reshape(1, D))


# --------------------------------------------------------------------------
# Kernel 4: head-batched flash-style attention.
#   q/k/v in (B, L, H*d) lane-dense layout, grid (B, q_tiles, kv_tiles),
#   online softmax per head, causal + key-PAD mask regenerated in-kernel.
#   The 1/sqrt(d_qk) scale is folded into Wq at param-prep time.
# --------------------------------------------------------------------------
def _attention_kernel(q_ref, k_ref, v_ref, pad_ref, o_ref, m_ref, l_ref, acc_ref,
                      *, n_heads, d_qk, d_v, tq, tk):
    qi = pl.program_id(1)
    ki = pl.program_id(2)

    @pl.when(ki == 0)
    def _():
        m_ref[...] = jnp.full(m_ref.shape, NEG_INIT, jnp.float32)
        l_ref[...] = jnp.zeros(l_ref.shape, jnp.float32)
        acc_ref[...] = jnp.zeros(acc_ref.shape, jnp.float32)

    # Skip kv blocks that are entirely above the causal diagonal for this q block.
    @pl.when(ki * tk <= qi * tq + (tq - 1))
    def _():
        row = qi * tq + jax.lax.broadcasted_iota(jnp.int32, (tq, tk), 0)
        col = ki * tk + jax.lax.broadcasted_iota(jnp.int32, (tq, tk), 1)
        key_pad = pad_ref[0] > 0                        # (1, tk)
        mask = jnp.logical_or(col > row, key_pad)       # (tq, tk)

        qb = q_ref[0]                                   # (tq, H*d_qk) bf16 (pre-scaled)
        kb = k_ref[0]                                   # (tk, H*d_qk) bf16
        vb = v_ref[0]                                   # (tk, H*d_v)  bf16
        for h in range(n_heads):
            q_h = qb[:, h * d_qk:(h + 1) * d_qk]
            k_h = kb[:, h * d_qk:(h + 1) * d_qk]
            v_h = vb[:, h * d_v:(h + 1) * d_v]
            s = jax.lax.dot_general(q_h, k_h, (((1,), (1,)), ((), ())),
                                    preferred_element_type=jnp.float32)
            s = jnp.where(mask, MASK_FILL, s)
            m_prev = m_ref[h]                                        # (tq, 1)
            m_new = jnp.maximum(m_prev, jnp.max(s, axis=-1, keepdims=True))
            alpha = jnp.exp(m_prev - m_new)
            p = jnp.exp(s - m_new)
            l_ref[h] = alpha * l_ref[h] + jnp.sum(p, axis=-1, keepdims=True)
            acc_ref[h] = alpha * acc_ref[h] + jnp.dot(
                p.astype(jnp.bfloat16), v_h, preferred_element_type=jnp.float32)
            m_ref[h] = m_new

    @pl.when(ki == pl.num_programs(2) - 1)
    def _():
        # a fully-masked (PAD-query) row degrades to a uniform distribution, as in eval-mode torch
        cols = []
        for h in range(n_heads):
            inv = pl.reciprocal(l_ref[h], approx=True)               # (tq, 1)
            cols.append(acc_ref[h] * inv)
        o_ref[0] = jnp.concatenate(cols, axis=-1).astype(o_ref.dtype)


def pallas_attention(q, k, v, key_pad, n_heads, d_qk, d_v, tq=256, tkv=256):
    # q, k: (B, L, H*d_qk) bf16; v: (B, L, H*d_v) bf16; key_pad: (B, 1, L) int32
    B, L, _ = q.shape
    tq = _pick_tile(L, tq, 8)
    tkv = _pick_kv_tile(L, tkv)
    nq, nv = n_heads * d_qk, n_heads * d_v
    return pl.pallas_call(
        functools.partial(_attention_kernel, n_heads=n_heads, d_qk=d_qk, d_v=d_v,
                          tq=tq, tk=tkv),
        out_shape=jax.ShapeDtypeStruct((B, L, nv), jnp.bfloat16),
        grid=(B, L // tq, L // tkv),
        in_specs=[
            pl.BlockSpec((1, tq, nq), lambda b, i, j: (b, i, 0)),
            pl.BlockSpec((1, tkv, nq), lambda b, i, j: (b, j, 0)),
            pl.BlockSpec((1, tkv, nv), lambda b, i, j: (b, j, 0)),
            pl.BlockSpec((1, 1, tkv), lambda b, i, j: (b, 0, j)),
        ],
        out_specs=pl.BlockSpec((1, tq, nv), lambda b, i, j: (b, i, 0)),
        scratch_shapes=[pltpu.VMEM((n_heads, tq, 1), jnp.float32),
                        pltpu.VMEM((n_heads, tq, 1), jnp.float32),
                        pltpu.VMEM((n_heads, tq, d_v), jnp.float32)],
        compiler_params=pltpu.CompilerParams(
            dimension_semantics=("parallel", "parallel", "arbitrary"),
            vmem_limit_bytes=_vmem_limit()),
    )(q, k, v, key_pad)


# --------------------------------------------------------------------------
# Parameters
# --------------------------------------------------------------------------
def sinusoidal_pos(max_len, d_model):
    pos = np.arange(max_len)[:, None].astype(np.float64)
    i = np.arange(d_model)[None, :].astype(np.float64)
    angle = pos / np.power(10000.0, 2.0 * np.floor(i / 2.0) / d_model)
    pe = np.zeros((max_len, d_model), np.float32)
    pe[:, 0::2] = np.sin(angle[:, 0::2])
    pe[:, 1::2] = np.cos(angle[:, 1::2])
    return jnp.asarray(pe)


def init_params(key, vocab, max_len, n_heads, d_model, d_ff, d_qk, d_v, n_layers):
    """f32 master parameters (used by the pure-JAX reference)."""
    stdv = 1.0 / np.sqrt(d_model)

    def uni(k, shape, scale):
        return jax.random.uniform(k, shape, jnp.float32, -scale, scale)

    keys = jax.random.split(key, 2 + 6 * n_layers)
    ki = iter(keys)
    params = {"embedding": uni(next(ki), (vocab, d_model), stdv),
              "pos": sinusoidal_pos(max_len, d_model),
              "layers": []}
    for _ in range(n_layers):
        wq = uni(next(ki), (d_model, n_heads * d_qk), stdv)
        wk = uni(next(ki), (d_model, n_heads * d_qk), stdv)
        wv = uni(next(ki), (d_model, n_heads * d_v), stdv)
        params["layers"].append({
            "Wqkv": jnp.concatenate([wq, wk, wv], axis=1),   # fused QKV (use_proj_bias=False)
            "Wo": uni(next(ki), (n_heads * d_v, d_model), 1.0 / np.sqrt(n_heads * d_v)),
            "W1": uni(next(ki), (d_model, d_ff), stdv),
            "b1": jnp.zeros((d_ff,), jnp.float32),
            "W2ff": uni(next(ki), (d_ff, d_model), 1.0 / np.sqrt(d_ff)),
            "b2ff": jnp.zeros((d_model,), jnp.float32),
            "ln1_g": jnp.ones((d_model,), jnp.float32),
            "ln1_b": jnp.zeros((d_model,), jnp.float32),
            "ln2_g": jnp.ones((d_model,), jnp.float32),
            "ln2_b": jnp.zeros((d_model,), jnp.float32),
        })
    params["W_out"] = uni(next(ki), (d_model, vocab), stdv)
    params["b_out"] = jnp.zeros((vocab,), jnp.float32)   # TODO(synk): LM-head bias presence assumed (zero-init)
    return params


def prepare_kernel_params(p, n_heads, d_qk, d_v):
    """One-time: bf16 weights, output dims padded to 128 lanes, q-scale folded into Wq."""
    def pad_cols(w, m=128):
        n = w.shape[1]
        return jnp.pad(w, ((0, 0), (0, _round_up(n, m) - n)))

    nq = n_heads * d_qk
    out = {"embedding": p["embedding"], "pos": p["pos"], "layers": []}
    for lyr in p["layers"]:
        wqkv = lyr["Wqkv"].at[:, :nq].multiply(1.0 / np.sqrt(d_qk))   # fold attention scale
        F = lyr["W1"].shape[1]
        Fp = _round_up(F, 128)
        out["layers"].append({
            "Wqkv": pad_cols(wqkv).astype(jnp.bfloat16),
            "Wo": lyr["Wo"].astype(jnp.bfloat16),
            "W1": pad_cols(lyr["W1"]).astype(jnp.bfloat16),
            "b1": jnp.pad(lyr["b1"], (0, Fp - F)),
            "W2ff": jnp.pad(lyr["W2ff"], ((0, Fp - F), (0, 0))).astype(jnp.bfloat16),
            "b2ff": lyr["b2ff"],
            "ln1_g": lyr["ln1_g"], "ln1_b": lyr["ln1_b"],
            "ln2_g": lyr["ln2_g"], "ln2_b": lyr["ln2_b"],
        })
    V = p["W_out"].shape[1]
    Vp = _round_up(V, 128)
    out["W_out"] = jnp.pad(p["W_out"], ((0, 0), (0, Vp - V))).astype(jnp.bfloat16)
    out["b_out"] = jnp.pad(p["b_out"], (0, Vp - V))
    return out


# --------------------------------------------------------------------------
# Forward glue
# --------------------------------------------------------------------------
def transformer_lm_forward(params, tokens, n_heads, d_qk, d_v, vocab):
    """Mirrors TransformerLM.forward([tokens], return_states=False, compute_loss=False) -> logits."""
    B, L = tokens.shape
    D = params["embedding"].shape[1]
    M = B * L
    nq, nv = n_heads * d_qk, n_heads * d_v

    # embedding + sinusoidal positions (scale_embedding=False, emb_dropout=0, eval mode)
    h = params["embedding"][tokens] + params["pos"][None, :L, :]

    # only the (B, 1, L) key-is-PAD rows travel to the kernel; causal part rebuilt in-kernel
    key_pad = (tokens == PAD).astype(jnp.int32).reshape(B, 1, L)

    # TODO(synk): LMDecoder source not provided; standard pre-norm decoder assumed
    # (use_pre_norm=True, relu FFN, no Q/K/V/O bias, no final LayerNorm, separate output proj).
    for lyr in params["layers"]:
        # --- masked self-attention: fused LN -> QKV projection (bf16 out, lane-dense) ---
        qkv = pallas_ln_matmul(h.reshape(M, D), lyr["ln1_g"], lyr["ln1_b"], lyr["Wqkv"])
        q = qkv[:, :nq].reshape(B, L, nq)
        k = qkv[:, nq:2 * nq].reshape(B, L, nq)
        v = qkv[:, 2 * nq:2 * nq + nv].reshape(B, L, nv)
        attn = pallas_attention(q, k, v, key_pad, n_heads, d_qk, d_v)   # (B, L, H*d_v) bf16
        # output projection with the residual add fused into the matmul kernel
        h = pallas_matmul_bias(attn.reshape(M, nv), lyr["Wo"],
                               residual=h.reshape(M, D)).reshape(B, L, D)
        # --- feed-forward sublayer: one fused kernel (LN -> W1+relu -> W2 -> +residual) ---
        h = pallas_ffn(h.reshape(M, D), lyr["ln2_g"], lyr["ln2_b"],
                       lyr["W1"], lyr["b1"], lyr["W2ff"], lyr["b2ff"]).reshape(B, L, D)

    # output projection to the (lane-padded) vocabulary; slice back to the true vocab
    logits = pallas_matmul_bias(h.reshape(M, D), params["W_out"], params["b_out"])
    return logits[:, :vocab].reshape(B, L, vocab)


def reference_forward(params, tokens, n_heads, d_qk, d_v):
    """Pure-JAX f32 reference of the same (assumed) architecture, for a sanity check."""
    B, L = tokens.shape
    nq, nv = n_heads * d_qk, n_heads * d_v
    h = params["embedding"][tokens] + params["pos"][None, :L, :]
    causal = (jnp.triu(jnp.ones((L, L), jnp.int32), k=1) > 0)[None, None]
    keypad = (tokens == PAD)[:, None, None, :]
    mask = jnp.logical_or(causal, keypad)

    def ln(x, g, b):
        mu = x.mean(-1, keepdims=True)
        var = ((x - mu) ** 2).mean(-1, keepdims=True)
        return (x - mu) * jax.lax.rsqrt(var + LN_EPS) * g + b

    for lyr in params["layers"]:
        y = ln(h, lyr["ln1_g"], lyr["ln1_b"])
        qkv = y @ lyr["Wqkv"]
        q = qkv[..., :nq].reshape(B, L, n_heads, d_qk).transpose(0, 2, 1, 3)
        k = qkv[..., nq:2 * nq].reshape(B, L, n_heads, d_qk).transpose(0, 2, 1, 3)
        v = qkv[..., 2 * nq:].reshape(B, L, n_heads, d_v).transpose(0, 2, 1, 3)
        s = jnp.einsum("bhqd,bhkd->bhqk", q, k) / np.sqrt(d_qk)
        s = jnp.where(mask, MASK_FILL, s)
        p = jax.nn.softmax(s, axis=-1)
        a = jnp.einsum("bhqk,bhkd->bhqd", p, v).transpose(0, 2, 1, 3).reshape(B, L, nv)
        h = h + a @ lyr["Wo"]
        y = ln(h, lyr["ln2_g"], lyr["ln2_b"])
        h = h + jnp.maximum(y @ lyr["W1"] + lyr["b1"], 0.0) @ lyr["W2ff"] + lyr["b2ff"]
    return h @ params["W_out"] + params["b_out"]


# --------------------------------------------------------------------------
# Main
# --------------------------------------------------------------------------
if __name__ == "__main__":
    trg_vocab_size = 50
    trg_max_len = 16
    n_heads = 4
    d_model = 32
    d_ff = 64
    d_qk = 8
    d_v = 8
    n_dec_layers = 2
    B, L = 2, 8

    key = jax.random.PRNGKey(0)
    pkey, xkey = jax.random.split(key)
    master = init_params(pkey, trg_vocab_size, trg_max_len, n_heads,
                         d_model, d_ff, d_qk, d_v, n_dec_layers)
    kparams = prepare_kernel_params(master, n_heads, d_qk, d_v)

    tokens = jax.random.randint(xkey, (B, L), 7, trg_vocab_size, dtype=jnp.int32)
    tokens = tokens.at[:, 0].set(BOS)
    tokens = tokens.at[1, -2:].set(PAD)        # exercise the key-PAD part of the mask

    fwd = jax.jit(functools.partial(transformer_lm_forward,
                                    n_heads=n_heads, d_qk=d_qk, d_v=d_v,
                                    vocab=trg_vocab_size))
    logits = fwd(kparams, tokens)
    jax.block_until_ready(logits)

    ref = reference_forward(master, tokens, n_heads, d_qk, d_v)
    assert logits.shape == (B, L, trg_vocab_size)
    assert bool(jnp.all(jnp.isfinite(logits)))
    max_err = float(jnp.max(jnp.abs(logits - ref)))
    assert max_err < 0.5, f"kernel vs reference mismatch: {max_err}"
    print("KERNEL_OK")
</pallas_src>

<mosaic_0001>
module attributes {stable_mosaic.version = 11 : i64} {
  func.func @_ln_matmul_kernel(%arg0: i32, %arg1: i32, %arg2: memref<16x32xf32, #tpu.memory_space<vmem>>, %arg3: memref<1x32xf32, #tpu.memory_space<vmem>>, %arg4: memref<1x32xf32, #tpu.memory_space<vmem>>, %arg5: memref<32x128xbf16, #tpu.memory_space<vmem>>, %arg6: memref<16x128xbf16, #tpu.memory_space<vmem>>, %arg7: memref<16x32xbf16, #tpu.memory_space<vmem>>) attributes {dimension_semantics = [#tpu.dimension_semantics<parallel>, #tpu.dimension_semantics<arbitrary>], iteration_bounds = array<i64: 1, 1>, scalar_prefetch = 0 : i64, scratch_operands = 1 : i64, tpu.core_type = #tpu.core_type<tc>, window_params = [{transform_indices = @transform_0, window_bounds = array<i64: 16, 32>}, {pipeline_mode = #tpu.pipeline_mode<synchronous>, transform_indices = @transform_1, window_bounds = array<i64: 1, 32>}, {pipeline_mode = #tpu.pipeline_mode<synchronous>, transform_indices = @transform_2, window_bounds = array<i64: 1, 32>}, {transform_indices = @transform_3, window_bounds = array<i64: 32, 128>}, {transform_indices = @transform_4, window_bounds = array<i64: 16, 128>}]} {
    %c0_i32 = arith.constant 0 : i32
    %0 = arith.cmpi eq, %arg1, %c0_i32 : i32
    %1 = arith.extui %0 : i1 to i32
    %c0_i32_0 = arith.constant 0 : i32
    %2 = arith.cmpi ne, %1, %c0_i32_0 : i32
    scf.if %2 {
      %c0_6 = arith.constant 0 : index
      %c0_7 = arith.constant 0 : index
      %8 = vector.load %arg2[%c0_6, %c0_7] : memref<16x32xf32, #tpu.memory_space<vmem>>, vector<16x32xf32>
      %cst_8 = arith.constant dense<0.000000e+00> : vector<16xf32>
      %9 = vector.multi_reduction <add>, %8, %cst_8 [1] : vector<16x32xf32> to vector<16xf32>
      %10 = vector.shape_cast %9 : vector<16xf32> to vector<16x1xf32>
      %cst_9 = arith.constant 3.200000e+01 : f32
      %11 = vector.broadcast %cst_9 : f32 to vector<16x1xf32>
      %12 = arith.divf %10, %11 : vector<16x1xf32>
      %13 = vector.broadcast %12 : vector<16x1xf32> to vector<16x32xf32>
      %14 = arith.subf %8, %13 : vector<16x32xf32>
      %15 = vector.broadcast %12 : vector<16x1xf32> to vector<16x32xf32>
      %16 = arith.subf %8, %15 : vector<16x32xf32>
      %17 = arith.mulf %14, %16 : vector<16x32xf32>
      %cst_10 = arith.constant dense<0.000000e+00> : vector<16xf32>
      %18 = vector.multi_reduction <add>, %17, %cst_10 [1] : vector<16x32xf32> to vector<16xf32>
      %19 = vector.shape_cast %18 : vector<16xf32> to vector<16x1xf32>
      %cst_11 = arith.constant 3.200000e+01 : f32
      %20 = vector.broadcast %cst_11 : f32 to vector<16x1xf32>
      %21 = arith.divf %19, %20 : vector<16x1xf32>
      %22 = vector.broadcast %12 : vector<16x1xf32> to vector<16x32xf32>
      %23 = arith.subf %8, %22 : vector<16x32xf32>
      %cst_12 = arith.constant 9.99999974E-6 : f32
      %24 = vector.broadcast %cst_12 : f32 to vector<16x1xf32>
      %25 = arith.addf %21, %24 : vector<16x1xf32>
      %26 = math.rsqrt %25 : vector<16x1xf32>
      %27 = vector.broadcast %26 : vector<16x1xf32> to vector<16x32xf32>
      %28 = arith.mulf %23, %27 : vector<16x32xf32>
      %c0_13 = arith.constant 0 : index
      %c0_14 = arith.constant 0 : index
      %29 = vector.load %arg3[%c0_13, %c0_14] : memref<1x32xf32, #tpu.memory_space<vmem>>, vector<1x32xf32>
      %30 = vector.broadcast %29 : vector<1x32xf32> to vector<16x32xf32>
      %31 = arith.mulf %28, %30 : vector<16x32xf32>
      %c0_15 = arith.constant 0 : index
      %c0_16 = arith.constant 0 : index
      %32 = vector.load %arg4[%c0_15, %c0_16] : memref<1x32xf32, #tpu.memory_space<vmem>>, vector<1x32xf32>
      %33 = vector.broadcast %32 : vector<1x32xf32> to vector<16x32xf32>
      %34 = arith.addf %31, %33 : vector<16x32xf32>
      %35 = arith.truncf %34 : vector<16x32xf32> to vector<16x32xbf16>
      %c0_17 = arith.constant 0 : index
      %c0_18 = arith.constant 0 : index
      %36 = vector.load %arg7[%c0_17, %c0_18] : memref<16x32xbf16, #tpu.memory_space<vmem>>, vector<16x32xbf16>
      tpu.vector_store %arg7[%c0_17, %c0_18], %35 {strides = array<i32>} : memref<16x32xbf16, #tpu.memory_space<vmem>>, vector<16x32xbf16>,
    } else {
    }
    %c0 = arith.constant 0 : index
    %c0_1 = arith.constant 0 : index
    %3 = vector.load %arg7[%c0, %c0_1] : memref<16x32xbf16, #tpu.memory_space<vmem>>, vector<16x32xbf16>
    %c0_2 = arith.constant 0 : index
    %c0_3 = arith.constant 0 : index
    %4 = vector.load %arg5[%c0_2, %c0_3] : memref<32x128xbf16, #tpu.memory_space<vmem>>, vector<32x128xbf16>
    %cst = arith.constant dense<0.000000e+00> : vector<16x128xf32>
    %5 = tpu.matmul %3, %4, %cst {dimension_numbers = #tpu.dot_dimension_numbers<[1], [0], [0], [1], [0, 0, 1, 1], [], []>} : vector<16x32xbf16>, vector<32x128xbf16>, vector<16x128xf32> -> vector<16x128xf32>
    %6 = arith.truncf %5 : vector<16x128xf32> to vector<16x128xbf16>
    %c0_4 = arith.constant 0 : index
    %c0_5 = arith.constant 0 : index
    %7 = vector.load %arg6[%c0_4, %c0_5] : memref<16x128xbf16, #tpu.memory_space<vmem>>, vector<16x128xbf16>
    tpu.vector_store %arg6[%c0_4, %c0_5], %6 {strides = array<i32>} : memref<16x128xbf16, #tpu.memory_space<vmem>>, vector<16x128xbf16>,
    return
  }
  func.func @transform_0(%arg0: i32, %arg1: i32) -> (i32, i32) {
    %c0_i32 = arith.constant 0 : i32
    %c0_i32_0 = arith.constant 0 : i32
    return %arg0, %c0_i32 : i32, i32
  }
  func.func @transform_1(%arg0: i32, %arg1: i32) -> (i32, i32) {
    %c0_i32 = arith.constant 0 : i32
    %c0_i32_0 = arith.constant 0 : i32
    %c0_i32_1 = arith.constant 0 : i32
    return %c0_i32, %c0_i32_0 : i32, i32
  }
  func.func @transform_2(%arg0: i32, %arg1: i32) -> (i32, i32) {
    %c0_i32 = arith.constant 0 : i32
    %c0_i32_0 = arith.constant 0 : i32
    %c0_i32_1 = arith.constant 0 : i32
    return %c0_i32, %c0_i32_0 : i32, i32
  }
  func.func @transform_3(%arg0: i32, %arg1: i32) -> (i32, i32) {
    %c0_i32 = arith.constant 0 : i32
    %c0_i32_0 = arith.constant 0 : i32
    return %c0_i32, %arg1 : i32, i32
  }
  func.func @transform_4(%arg0: i32, %arg1: i32) -> (i32, i32) {
    %c0_i32 = arith.constant 0 : i32
    return %arg0, %arg1 : i32, i32
  }
}

module attributes {stable_mosaic.version = 11 : i64} {
  func.func @_attention_kernel(%arg0: i32, %arg1: i32, %arg2: i32, %arg3: memref<1x8x32xbf16, #tpu.memory_space<vmem>>, %arg4: memref<1x8x32xbf16, #tpu.memory_space<vmem>>, %arg5: memref<1x8x32xbf16, #tpu.memory_space<vmem>>, %arg6: memref<1x1x8xi32, #tpu.memory_space<vmem>>, %arg7: memref<1x8x32xbf16, #tpu.memory_space<vmem>>, %arg8: memref<4x8x1xf32, #tpu.memory_space<vmem>>, %arg9: memref<4x8x1xf32, #tpu.memory_space<vmem>>, %arg10: memref<4x8x8xf32, #tpu.memory_space<vmem>>) attributes {dimension_semantics = [#tpu.dimension_semantics<parallel>, #tpu.dimension_semantics<parallel>, #tpu.dimension_semantics<arbitrary>], iteration_bounds = array<i64: 2, 1, 1>, scalar_prefetch = 0 : i64, scratch_operands = 3 : i64, tpu.core_type = #tpu.core_type<tc>, window_params = [{transform_indices = @transform_0, window_bounds = array<i64: 1, 8, 32>}, {transform_indices = @transform_1, window_bounds = array<i64: 1, 8, 32>}, {transform_indices = @transform_2, window_bounds = array<i64: 1, 8, 32>}, {transform_indices = @transform_3, window_bounds = array<i64: 1, 1, 8>}, {transform_indices = @transform_4, window_bounds = array<i64: 1, 8, 32>}]} {
    %c0_i32 = arith.constant 0 : i32
    %0 = arith.cmpi eq, %arg2, %c0_i32 : i32
    %1 = arith.extui %0 : i1 to i32
    %c0_i32_0 = arith.constant 0 : i32
    %2 = arith.cmpi ne, %1, %c0_i32_0 : i32
    scf.if %2 {
      %cst = arith.constant -1.000000e+30 : f32
      %12 = vector.broadcast %cst : f32 to vector<4x8x1xf32>
      %c0 = arith.constant 0 : index
      %c0_5 = arith.constant 0 : index
      %c0_6 = arith.constant 0 : index
      %13 = vector.load %arg8[%c0, %c0_5, %c0_6] : memref<4x8x1xf32, #tpu.memory_space<vmem>>, vector<4x8x1xf32>
      tpu.vector_store %arg8[%c0, %c0_5, %c0_6], %12 {strides = array<i32>} : memref<4x8x1xf32, #tpu.memory_space<vmem>>, vector<4x8x1xf32>,
      %cst_7 = arith.constant 0.000000e+00 : f32
      %14 = vector.broadcast %cst_7 : f32 to vector<4x8x1xf32>
      %c0_8 = arith.constant 0 : index
      %c0_9 = arith.constant 0 : index
      %c0_10 = arith.constant 0 : index
      %15 = vector.load %arg9[%c0_8, %c0_9, %c0_10] : memref<4x8x1xf32, #tpu.memory_space<vmem>>, vector<4x8x1xf32>
      tpu.vector_store %arg9[%c0_8, %c0_9, %c0_10], %14 {strides = array<i32>} : memref<4x8x1xf32, #tpu.memory_space<vmem>>, vector<4x8x1xf32>,
      %cst_11 = arith.constant 0.000000e+00 : f32
      %16 = vector.broadcast %cst_11 : f32 to vector<4x8x8xf32>
      %c0_12 = arith.constant 0 : index
      %c0_13 = arith.constant 0 : index
      %c0_14 = arith.constant 0 : index
      %17 = vector.load %arg10[%c0_12, %c0_13, %c0_14] : memref<4x8x8xf32, #tpu.memory_space<vmem>>, vector<4x8x8xf32>
      tpu.vector_store %arg10[%c0_12, %c0_13, %c0_14], %16 {strides = array<i32>} : memref<4x8x8xf32, #tpu.memory_space<vmem>>, vector<4x8x8xf32>,
    } else {
    }
    %c8_i32 = arith.constant 8 : i32
    %3 = arith.muli %arg2, %c8_i32 : i32
    %c8_i32_1 = arith.constant 8 : i32
    %4 = arith.muli %arg1, %c8_i32_1 : i32
    %c7_i32 = arith.constant 7 : i32
    %5 = arith.addi %4, %c7_i32 : i32
    %6 = arith.cmpi sle, %3, %5 : i32
    %7 = arith.extui %6 : i1 to i32
    %c0_i32_2 = arith.constant 0 : i32
    %8 = arith.cmpi ne, %7, %c0_i32_2 : i32
    scf.if %8 {
      %c8_i32_5 = arith.constant 8 : i32
      %12 = arith.muli %arg1, %c8_i32_5 : i32
      %13 = tpu.iota {dimensions = array<i32: 0>} : vector<8x8xi32>
      %14 = vector.broadcast %12 : i32 to vector<8x8xi32>
      %15 = arith.addi %14, %13 : vector<8x8xi32>
      %c8_i32_6 = arith.constant 8 : i32
      %16 = arith.muli %arg2, %c8_i32_6 : i32
      %17 = tpu.iota {dimensions = array<i32: 1>} : vector<8x8xi32>
      %18 = vector.broadcast %16 : i32 to vector<8x8xi32>
      %19 = arith.addi %18, %17 : vector<8x8xi32>
      %c0 = arith.constant 0 : index
      %c0_7 = arith.constant 0 : index
      %c0_8 = arith.constant 0 : index
      %20 = vector.load %arg6[%c0, %c0_7, %c0_8] : memref<1x1x8xi32, #tpu.memory_space<vmem>>, vector<1x1x8xi32>
      %21 = vector.shape_cast %20 : vector<1x1x8xi32> to vector<1x8xi32>
      %c0_i32_9 = arith.constant 0 : i32
      %22 = vector.broadcast %c0_i32_9 : i32 to vector<1x8xi32>
      %23 = arith.cmpi sgt, %21, %22 : vector<1x8xi32>
      %24 = arith.cmpi sgt, %19, %15 : vector<8x8xi32>
      %25 = vector.broadcast %23 : vector<1x8xi1> to vector<8x8xi1>
      %26 = arith.ori %24, %25 : vector<8x8xi1>
      %c0_10 = arith.constant 0 : index
      %c0_11 = arith.constant 0 : index
      %c0_12 = arith.constant 0 : index
      %27 = vector.load %arg3[%c0_10, %c0_11, %c0_12] : memref<1x8x32xbf16, #tpu.memory_space<vmem>>, vector<1x8x32xbf16>
      %28 = vector.shape_cast %27 : vector<1x8x32xbf16> to vector<8x32xbf16>
      %c0_13 = arith.constant 0 : index
      %c0_14 = arith.constant 0 : index
      %c0_15 = arith.constant 0 : index
      %29 = vector.load %arg4[%c0_13, %c0_14, %c0_15] : memref<1x8x32xbf16, #tpu.memory_space<vmem>>, vector<1x8x32xbf16>
      %30 = vector.shape_cast %29 : vector<1x8x32xbf16> to vector<8x32xbf16>
      %c0_16 = arith.constant 0 : index
      %c0_17 = arith.constant 0 : index
      %c0_18 = arith.constant 0 : index
      %31 = vector.load %arg5[%c0_16, %c0_17, %c0_18] : memref<1x8x32xbf16, #tpu.memory_space<vmem>>, vector<1x8x32xbf16>
      %32 = vector.shape_cast %31 : vector<1x8x32xbf16> to vector<8x32xbf16>
      %33 = vector.extract_strided_slice %28 {offsets = [0, 0], sizes = [8, 8], strides = [1, 1]} : vector<8x32xbf16> to vector<8x8xbf16>
      %34 = vector.extract_strided_slice %30 {offsets = [0, 0], sizes = [8, 8], strides = [1, 1]} : vector<8x32xbf16> to vector<8x8xbf16>
      %35 = vector.extract_strided_slice %32 {offsets = [0, 0], sizes = [8, 8], strides = [1, 1]} : vector<8x32xbf16> to vector<8x8xbf16>
      %cst = arith.constant dense<0.000000e+00> : vector<8x8xf32>
      %36 = tpu.matmul %33, %34, %cst {dimension_numbers = #tpu.dot_dimension_numbers<[1], [1], [0], [0], [0, 0, 1, 0], [], []>} : vector<8x8xbf16>, vector<8x8xbf16>, vector<8x8xf32> -> vector<8x8xf32>
      %cst_19 = arith.constant -1.000000e+09 : f32
      %37 = vector.broadcast %cst_19 : f32 to vector<8x8xf32>
      %38 = arith.select %26, %37, %36 : vector<8x8xi1>, vector<8x8xf32>
      %c0_20 = arith.constant 0 : index
      %c0_21 = arith.constant 0 : index
      %c0_22 = arith.constant 0 : index
      %39 = vector.load %arg8[%c0_20, %c0_21, %c0_22] : memref<4x8x1xf32, #tpu.memory_space<vmem>>, vector<1x8x1xf32>
      %40 = vector.shape_cast %39 : vector<1x8x1xf32> to vector<8x1xf32>
      %cst_23 = arith.constant dense<0xFF800000> : vector<8xf32>
      %41 = vector.multi_reduction <maximumf>, %38, %cst_23 [1] : vector<8x8xf32> to vector<8xf32>
      %42 = vector.shape_cast %41 : vector<8xf32> to vector<8x1xf32>
      %43 = arith.maximumf %40, %42 : vector<8x1xf32>
      %44 = arith.subf %40, %43 : vector<8x1xf32>
      %45 = math.exp %44 : vector<8x1xf32>
      %46 = vector.broadcast %43 : vector<8x1xf32> to vector<8x8xf32>
      %47 = arith.subf %38, %46 : vector<8x8xf32>
      %48 = math.exp %47 : vector<8x8xf32>
      %c0_24 = arith.constant 0 : index
      %c0_25 = arith.constant 0 : index
      %c0_26 = arith.constant 0 : index
      %49 = vector.load %arg9[%c0_24, %c0_25, %c0_26] : memref<4x8x1xf32, #tpu.memory_space<vmem>>, vector<1x8x1xf32>
      %50 = vector.shape_cast %49 : vector<1x8x1xf32> to vector<8x1xf32>
      %51 = arith.mulf %45, %50 : vector<8x1xf32>
      %cst_27 = arith.constant dense<0.000000e+00> : vector<8xf32>
      %52 = vector.multi_reduction <add>, %48, %cst_27 [1] : vector<8x8xf32> to vector<8xf32>
      %53 = vector.shape_cast %52 : vector<8xf32> to vector<8x1xf32>
      %54 = arith.addf %51, %53 : vector<8x1xf32>
      %c0_28 = arith.constant 0 : index
      %c0_29 = arith.constant 0 : index
      %c0_30 = arith.constant 0 : index
      %55 = vector.load %arg9[%c0_28, %c0_29, %c0_30] : memref<4x8x1xf32, #tpu.memory_space<vmem>>, vector<1x8x1xf32>
      %56 = vector.shape_cast %55 : vector<1x8x1xf32> to vector<8x1xf32>
      %57 = vector.shape_cast %54 : vector<8x1xf32> to vector<1x8x1xf32>
      tpu.vector_store %arg9[%c0_28, %c0_29, %c0_30], %57 {strides = array<i32>} : memref<4x8x1xf32, #tpu.memory_space<vmem>>, vector<1x8x1xf32>,
      %c0_31 = arith.constant 0 : index
      %c0_32 = arith.constant 0 : index
      %c0_33 = arith.constant 0 : index
      %58 = vector.load %arg10[%c0_31, %c0_32, %c0_33] : memref<4x8x8xf32, #tpu.memory_space<vmem>>, vector<1x8x8xf32>
      %59 = vector.shape_cast %58 : vector<1x8x8xf32> to vector<8x8xf32>
      %60 = vector.broadcast %45 : vector<8x1xf32> to vector<8x8xf32>
      %61 = arith.mulf %60, %59 : vector<8x8xf32>
      %62 = arith.truncf %48 : vector<8x8xf32> to vector<8x8xbf16>
      %cst_34 = arith.constant dense<0.000000e+00> : vector<8x8xf32>
      %63 = tpu.matmul %62, %35, %cst_34 {dimension_numbers = #tpu.dot_dimension_numbers<[1], [0], [0], [1], [0, 0, 1, 1], [], []>} : vector<8x8xbf16>, vector<8x8xbf16>, vector<8x8xf32> -> vector<8x8xf32>
      %64 = arith.addf %61, %63 : vector<8x8xf32>
      %c0_35 = arith.constant 0 : index
      %c0_36 = arith.constant 0 : index
      %c0_37 = arith.constant 0 : index
      %65 = vector.load %arg10[%c0_35, %c0_36, %c0_37] : memref<4x8x8xf32, #tpu.memory_space<vmem>>, vector<1x8x8xf32>
      %66 = vector.shape_cast %65 : vector<1x8x8xf32> to vector<8x8xf32>
      %67 = vector.shape_cast %64 : vector<8x8xf32> to vector<1x8x8xf32>
      tpu.vector_store %arg10[%c0_35, %c0_36, %c0_37], %67 {strides = array<i32>} : memref<4x8x8xf32, #tpu.memory_space<vmem>>, vector<1x8x8xf32>,
      %c0_38 = arith.constant 0 : index
      %c0_39 = arith.constant 0 : index
      %c0_40 = arith.constant 0 : index
      %68 = vector.load %arg8[%c0_38, %c0_39, %c0_40] : memref<4x8x1xf32, #tpu.memory_space<vmem>>, vector<1x8x1xf32>
      %69 = vector.shape_cast %68 : vector<1x8x1xf32> to vector<8x1xf32>
      %70 = vector.shape_cast %43 : vector<8x1xf32> to vector<1x8x1xf32>
      tpu.vector_store %arg8[%c0_38, %c0_39, %c0_40], %70 {strides = array<i32>} : memref<4x8x1xf32, #tpu.memory_space<vmem>>, vector<1x8x1xf32>,
      %71 = vector.extract_strided_slice %28 {offsets = [0, 8], sizes = [8, 8], strides = [1, 1]} : vector<8x32xbf16> to vector<8x8xbf16>
      %72 = vector.extract_strided_slice %30 {offsets = [0, 8], sizes = [8, 8], strides = [1, 1]} : vector<8x32xbf16> to vector<8x8xbf16>
      %73 = vector.extract_strided_slice %32 {offsets = [0, 8], sizes = [8, 8], strides = [1, 1]} : vector<8x32xbf16> to vector<8x8xbf16>
      %cst_41 = arith.constant dense<0.000000e+00> : vector<8x8xf32>
      %74 = tpu.matmul %71, %72, %cst_41 {dimension_numbers = #tpu.dot_dimension_numbers<[1], [1], [0], [0], [0, 0, 1, 0], [], []>} : vector<8x8xbf16>, vector<8x8xbf16>, vector<8x8xf32> -> vector<8x8xf32>
      %cst_42 = arith.constant -1.000000e+09 : f32
      %75 = vector.broadcast %cst_42 : f32 to vector<8x8xf32>
      %76 = arith.select %26, %75, %74 : vector<8x8xi1>, vector<8x8xf32>
      %c1 = arith.constant 1 : index
      %c0_43 = arith.constant 0 : index
      %c0_44 = arith.constant 0 : index
      %77 = vector.load %arg8[%c1, %c0_43, %c0_44] : memref<4x8x1xf32, #tpu.memory_space<vmem>>, vector<1x8x1xf32>
      %78 = vector.shape_cast %77 : vector<1x8x1xf32> to vector<8x1xf32>
      %cst_45 = arith.constant dense<0xFF800000> : vector<8xf32>
      %79 = vector.multi_reduction <maximumf>, %76, %cst_45 [1] : vector<8x8xf32> to vector<8xf32>
      %80 = vector.shape_cast %79 : vector<8xf32> to vector<8x1xf32>
      %81 = arith.maximumf %78, %80 : vector<8x1xf32>
      %82 = arith.subf %78, %81 : vector<8x1xf32>
      %83 = math.exp %82 : vector<8x1xf32>
      %84 = vector.broadcast %81 : vector<8x1xf32> to vector<8x8xf32>
      %85 = arith.subf %76, %84 : vector<8x8xf32>
      %86 = math.exp %85 : vector<8x8xf32>
      %c1_46 = arith.constant 1 : index
      %c0_47 = arith.constant 0 : index
      %c0_48 = arith.constant 0 : index
      %87 = vector.load %arg9[%c1_46, %c0_47, %c0_48] : memref<4x8x1xf32, #tpu.memory_space<vmem>>, vector<1x8x1xf32>
      %88 = vector.shape_cast %87 : vector<1x8x1xf32> to vector<8x1xf32>
      %89 = arith.mulf %83, %88 : vector<8x1xf32>
      %cst_49 = arith.constant dense<0.000000e+00> : vector<8xf32>
      %90 = vector.multi_reduction <add>, %86, %cst_49 [1] : vector<8x8xf32> to vector<8xf32>
      %91 = vector.shape_cast %90 : vector<8xf32> to vector<8x1xf32>
      %92 = arith.addf %89, %91 : vector<8x1xf32>
      %c1_50 = arith.constant 1 : index
      %c0_51 = arith.constant 0 : index
      %c0_52 = arith.constant 0 : index
      %93 = vector.load %arg9[%c1_50, %c0_51, %c0_52] : memref<4x8x1xf32, #tpu.memory_space<vmem>>, vector<1x8x1xf32>
      %94 = vector.shape_cast %93 : vector<1x8x1xf32> to vector<8x1xf32>
      %95 = vector.shape_cast %92 : vector<8x1xf32> to vector<1x8x1xf32>
      tpu.vector_store %arg9[%c1_50, %c0_51, %c0_52], %95 {strides = array<i32>} : memref<4x8x1xf32, #tpu.memory_space<vmem>>, vector<1x8x1xf32>,
      %c1_53 = arith.constant 1 : index
      %c0_54 = arith.constant 0 : index
      %c0_55 = arith.constant 0 : index
      %96 = vector.load %arg10[%c1_53, %c0_54, %c0_55] : memref<4x8x8xf32, #tpu.memory_space<vmem>>, vector<1x8x8xf32>
      %97 = vector.shape_cast %96 : vector<1x8x8xf32> to vector<8x8xf32>
      %98 = vector.broadcast %83 : vector<8x1xf32> to vector<8x8xf32>
      %99 = arith.mulf %98, %97 : vector<8x8xf32>
      %100 = arith.truncf %86 : vector<8x8xf32> to vector<8x8xbf16>
      %cst_56 = arith.constant dense<0.000000e+00> : vector<8x8xf32>
      %101 = tpu.matmul %100, %73, %cst_56 {dimension_numbers = #tpu.dot_dimension_numbers<[1], [0], [0], [1], [0, 0, 1, 1], [], []>} : vector<8x8xbf16>, vector<8x8xbf16>, vector<8x8xf32> -> vector<8x8xf32>
      %102 = arith.addf %99, %101 : vector<8x8xf32>
      %c1_57 = arith.constant 1 : index
      %c0_58 = arith.constant 0 : index
      %c0_59 = arith.constant 0 : index
      %103 = vector.load %arg10[%c1_57, %c0_58, %c0_59] : memref<4x8x8xf32, #tpu.memory_space<vmem>>, vector<1x8x8xf32>
      %104 = vector.shape_cast %103 : vector<1x8x8xf32> to vector<8x8xf32>
      %105 = vector.shape_cast %102 : vector<8x8xf32> to vector<1x8x8xf32>
      tpu.vector_store %arg10[%c1_57, %c0_58, %c0_59], %105 {strides = array<i32>} : memref<4x8x8xf32, #tpu.memory_space<vmem>>, vector<1x8x8xf32>,
      %c1_60 = arith.constant 1 : index
      %c0_61 = arith.constant 0 : index
      %c0_62 = arith.constant 0 : index
      %106 = vector.load %arg8[%c1_60, %c0_61, %c0_62] : memref<4x8x1xf32, #tpu.memory_space<vmem>>, vector<1x8x1xf32>
      %107 = vector.shape_cast %106 : vector<1x8x1xf32> to vector<8x1xf32>
      %108 = vector.shape_cast %81 : vector<8x1xf32> to vector<1x8x1xf32>
      tpu.vector_store %arg8[%c1_60, %c0_61, %c0_62], %108 {strides = array<i32>} : memref<4x8x1xf32, #tpu.memory_space<vmem>>, vector<1x8x1xf32>,
      %109 = vector.extract_strided_slice %28 {offsets = [0, 16], sizes = [8, 8], strides = [1, 1]} : vector<8x32xbf16> to vector<8x8xbf16>
      %110 = vector.extract_strided_slice %30 {offsets = [0, 16], sizes = [8, 8], strides = [1, 1]} : vector<8x32xbf16> to vector<8x8xbf16>
      %111 = vector.extract_strided_slice %32 {offsets = [0, 16], sizes = [8, 8], strides = [1, 1]} : vector<8x32xbf16> to vector<8x8xbf16>
      %cst_63 = arith.constant dense<0.000000e+00> : vector<8x8xf32>
      %112 = tpu.matmul %109, %110, %cst_63 {dimension_numbers = #tpu.dot_dimension_numbers<[1], [1], [0], [0], [0, 0, 1, 0], [], []>} : vector<8x8xbf16>, vector<8x8xbf16>, vector<8x8xf32> -> vector<8x8xf32>
      %cst_64 = arith.constant -1.000000e+09 : f32
      %113 = vector.broadcast %cst_64 : f32 to vector<8x8xf32>
      %114 = arith.select %26, %113, %112 : vector<8x8xi1>, vector<8x8xf32>
      %c2 = arith.constant 2 : index
      %c0_65 = arith.constant 0 : index
      %c0_66 = arith.constant 0 : index
      %115 = vector.load %arg8[%c2, %c0_65, %c0_66] : memref<4x8x1xf32, #tpu.memory_space<vmem>>, vector<1x8x1xf32>
      %116 = vector.shape_cast %115 : vector<1x8x1xf32> to vector<8x1xf32>
      %cst_67 = arith.constant dense<0xFF800000> : vector<8xf32>
      %117 = vector.multi_reduction <maximumf>, %114, %cst_67 [1] : vector<8x8xf32> to vector<8xf32>
      %118 = vector.shape_cast %117 : vector<8xf32> to vector<8x1xf32>
      %119 = arith.maximumf %116, %118 : vector<8x1xf32>
      %120 = arith.subf %116, %119 : vector<8x1xf32>
      %121 = math.exp %120 : vector<8x1xf32>
      %122 = vector.broadcast %119 : vector<8x1xf32> to vector<8x8xf32>
      %123 = arith.subf %114, %122 : vector<8x8xf32>
      %124 = math.exp %123 : vector<8x8xf32>
      %c2_68 = arith.constant 2 : index
      %c0_69 = arith.constant 0 : index
      %c0_70 = arith.constant 0 : index
      %125 = vector.load %arg9[%c2_68, %c0_69, %c0_70] : memref<4x8x1xf32, #tpu.memory_space<vmem>>, vector<1x8x1xf32>
      %126 = vector.shape_cast %125 : vector<1x8x1xf32> to vector<8x1xf32>
      %127 = arith.mulf %121, %126 : vector<8x1xf32>
      %cst_71 = arith.constant dense<0.000000e+00> : vector<8xf32>
      %128 = vector.multi_reduction <add>, %124, %cst_71 [1] : vector<8x8xf32> to vector<8xf32>
      %129 = vector.shape_cast %128 : vector<8xf32> to vector<8x1xf32>
      %130 = arith.addf %127, %129 : vector<8x1xf32>
      %c2_72 = arith.constant 2 : index
      %c0_73 = arith.constant 0 : index
      %c0_74 = arith.constant 0 : index
      %131 = vector.load %arg9[%c2_72, %c0_73, %c0_74] : memref<4x8x1xf32, #tpu.memory_space<vmem>>, vector<1x8x1xf32>
      %132 = vector.shape_cast %131 : vector<1x8x1xf32> to vector<8x1xf32>
      %133 = vector.shape_cast %130 : vector<8x1xf32> to vector<1x8x1xf32>
      tpu.vector_store %arg9[%c2_72, %c0_73, %c0_74], %133 {strides = array<i32>} : memref<4x8x1xf32, #tpu.memory_space<vmem>>, vector<1x8x1xf32>,
      %c2_75 = arith.constant 2 : index
      %c0_76 = arith.constant 0 : index
      %c0_77 = arith.constant 0 : index
      %134 = vector.load %arg10[%c2_75, %c0_76, %c0_77] : memref<4x8x8xf32, #tpu.memory_space<vmem>>, vector<1x8x8xf32>
      %135 = vector.shape_cast %134 : vector<1x8x8xf32> to vector<8x8xf32>
      %136 = vector.broadcast %121 : vector<8x1xf32> to vector<8x8xf32>
      %137 = arith.mulf %136, %135 : vector<8x8xf32>
      %138 = arith.truncf %124 : vector<8x8xf32> to vector<8x8xbf16>
      %cst_78 = arith.constant dense<0.000000e+00> : vector<8x8xf32>
      %139 = tpu.matmul %138, %111, %cst_78 {dimension_numbers = #tpu.dot_dimension_numbers<[1], [0], [0], [1], [0, 0, 1, 1], [], []>} : vector<8x8xbf16>, vector<8x8xbf16>, vector<8x8xf32> -> vector<8x8xf32>
      %140 = arith.addf %137, %139 : vector<8x8xf32>
      %c2_79 = arith.constant 2 : index
      %c0_80 = arith.constant 0 : index
      %c0_81 = arith.constant 0 : index
      %141 = vector.load %arg10[%c2_79, %c0_80, %c0_81] : memref<4x8x8xf32, #tpu.memory_space<vmem>>, vector<1x8x8xf32>
      %142 = vector.shape_cast %141 : vector<1x8x8xf32> to vector<8x8xf32>
      %143 = vector.shape_cast %140 : vector<8x8xf32> to vector<1x8x8xf32>
      tpu.vector_store %arg10[%c2_79, %c0_80, %c0_81], %143 {strides = array<i32>} : memref<4x8x8xf32, #tpu.memory_space<vmem>>, vector<1x8x8xf32>,
      %c2_82 = arith.constant 2 : index
      %c0_83 = arith.constant 0 : index
      %c0_84 = arith.constant 0 : index
      %144 = vector.load %arg8[%c2_82, %c0_83, %c0_84] : memref<4x8x1xf32, #tpu.memory_space<vmem>>, vector<1x8x1xf32>
      %145 = vector.shape_cast %144 : vector<1x8x1xf32> to vector<8x1xf32>
      %146 = vector.shape_cast %119 : vector<8x1xf32> to vector<1x8x1xf32>
      tpu.vector_store %arg8[%c2_82, %c0_83, %c0_84], %146 {strides = array<i32>} : memref<4x8x1xf32, #tpu.memory_space<vmem>>, vector<1x8x1xf32>,
      %147 = vector.extract_strided_slice %28 {offsets = [0, 24], sizes = [8, 8], strides = [1, 1]} : vector<8x32xbf16> to vector<8x8xbf16>
      %148 = vector.extract_strided_slice %30 {offsets = [0, 24], sizes = [8, 8], strides = [1, 1]} : vector<8x32xbf16> to vector<8x8xbf16>
      %149 = vector.extract_strided_slice %32 {offsets = [0, 24], sizes = [8, 8], strides = [1, 1]} : vector<8x32xbf16> to vector<8x8xbf16>
      %cst_85 = arith.constant dense<0.000000e+00> : vector<8x8xf32>
      %150 = tpu.matmul %147, %148, %cst_85 {dimension_numbers = #tpu.dot_dimension_numbers<[1], [1], [0], [0], [0, 0, 1, 0], [], []>} : vector<8x8xbf16>, vector<8x8xbf16>, vector<8x8xf32> -> vector<8x8xf32>
      %cst_86 = arith.constant -1.000000e+09 : f32
      %151 = vector.broadcast %cst_86 : f32 to vector<8x8xf32>
      %152 = arith.select %26, %151, %150 : vector<8x8xi1>, vector<8x8xf32>
      %c3 = arith.constant 3 : index
      %c0_87 = arith.constant 0 : index
      %c0_88 = arith.constant 0 : index
      %153 = vector.load %arg8[%c3, %c0_87, %c0_88] : memref<4x8x1xf32, #tpu.memory_space<vmem>>, vector<1x8x1xf32>
      %154 = vector.shape_cast %153 : vector<1x8x1xf32> to vector<8x1xf32>
      %cst_89 = arith.constant dense<0xFF800000> : vector<8xf32>
      %155 = vector.multi_reduction <maximumf>, %152, %cst_89 [1] : vector<8x8xf32> to vector<8xf32>
      %156 = vector.shape_cast %155 : vector<8xf32> to vector<8x1xf32>
      %157 = arith.maximumf %154, %156 : vector<8x1xf32>
      %158 = arith.subf %154, %157 : vector<8x1xf32>
      %159 = math.exp %158 : vector<8x1xf32>
      %160 = vector.broadcast %157 : vector<8x1xf32> to vector<8x8xf32>
      %161 = arith.subf %152, %160 : vector<8x8xf32>
      %162 = math.exp %161 : vector<8x8xf32>
      %c3_90 = arith.constant 3 : index
      %c0_91 = arith.constant 0 : index
      %c0_92 = arith.constant 0 : index
      %163 = vector.load %arg9[%c3_90, %c0_91, %c0_92] : memref<4x8x1xf32, #tpu.memory_space<vmem>>, vector<1x8x1xf32>
      %164 = vector.shape_cast %163 : vector<1x8x1xf32> to vector<8x1xf32>
      %165 = arith.mulf %159, %164 : vector<8x1xf32>
      %cst_93 = arith.constant dense<0.000000e+00> : vector<8xf32>
      %166 = vector.multi_reduction <add>, %162, %cst_93 [1] : vector<8x8xf32> to vector<8xf32>
      %167 = vector.shape_cast %166 : vector<8xf32> to vector<8x1xf32>
      %168 = arith.addf %165, %167 : vector<8x1xf32>
      %c3_94 = arith.constant 3 : index
      %c0_95 = arith.constant 0 : index
      %c0_96 = arith.constant 0 : index
      %169 = vector.load %arg9[%c3_94, %c0_95, %c0_96] : memref<4x8x1xf32, #tpu.memory_space<vmem>>, vector<1x8x1xf32>
      %170 = vector.shape_cast %169 : vector<1x8x1xf32> to vector<8x1xf32>
      %171 = vector.shape_cast %168 : vector<8x1xf32> to vector<1x8x1xf32>
      tpu.vector_store %arg9[%c3_94, %c0_95, %c0_96], %171 {strides = array<i32>} : memref<4x8x1xf32, #tpu.memory_space<vmem>>, vector<1x8x1xf32>,
      %c3_97 = arith.constant 3 : index
      %c0_98 = arith.constant 0 : index
      %c0_99 = arith.constant 0 : index
      %172 = vector.load %arg10[%c3_97, %c0_98, %c0_99] : memref<4x8x8xf32, #tpu.memory_space<vmem>>, vector<1x8x8xf32>
      %173 = vector.shape_cast %172 : vector<1x8x8xf32> to vector<8x8xf32>
      %174 = vector.broadcast %159 : vector<8x1xf32> to vector<8x8xf32>
      %175 = arith.mulf %174, %173 : vector<8x8xf32>
      %176 = arith.truncf %162 : vector<8x8xf32> to vector<8x8xbf16>
      %cst_100 = arith.constant dense<0.000000e+00> : vector<8x8xf32>
      %177 = tpu.matmul %176, %149, %cst_100 {dimension_numbers = #tpu.dot_dimension_numbers<[1], [0], [0], [1], [0, 0, 1, 1], [], []>} : vector<8x8xbf16>, vector<8x8xbf16>, vector<8x8xf32> -> vector<8x8xf32>
      %178 = arith.addf %175, %177 : vector<8x8xf32>
      %c3_101 = arith.constant 3 : index
      %c0_102 = arith.constant 0 : index
      %c0_103 = arith.constant 0 : index
      %179 = vector.load %arg10[%c3_101, %c0_102, %c0_103] : memref<4x8x8xf32, #tpu.memory_space<vmem>>, vector<1x8x8xf32>
      %180 = vector.shape_cast %179 : vector<1x8x8xf32> to vector<8x8xf32>
      %181 = vector.shape_cast %178 : vector<8x8xf32> to vector<1x8x8xf32>
      tpu.vector_store %arg10[%c3_101, %c0_102, %c0_103], %181 {strides = array<i32>} : memref<4x8x8xf32, #tpu.memory_space<vmem>>, vector<1x8x8xf32>,
      %c3_104 = arith.constant 3 : index
      %c0_105 = arith.constant 0 : index
      %c0_106 = arith.constant 0 : index
      %182 = vector.load %arg8[%c3_104, %c0_105, %c0_106] : memref<4x8x1xf32, #tpu.memory_space<vmem>>, vector<1x8x1xf32>
      %183 = vector.shape_cast %182 : vector<1x8x1xf32> to vector<8x1xf32>
      %184 = vector.shape_cast %157 : vector<8x1xf32> to vector<1x8x1xf32>
      tpu.vector_store %arg8[%c3_104, %c0_105, %c0_106], %184 {strides = array<i32>} : memref<4x8x1xf32, #tpu.memory_space<vmem>>, vector<1x8x1xf32>,
    } else {
    }
    %c0_i32_3 = arith.constant 0 : i32
    %9 = arith.cmpi eq, %arg2, %c0_i32_3 : i32
    %10 = arith.extui %9 : i1 to i32
    %c0_i32_4 = arith.constant 0 : i32
    %11 = arith.cmpi ne, %10, %c0_i32_4 : i32
    scf.if %11 {
      %c0 = arith.constant 0 : index
      %c0_5 = arith.constant 0 : index
      %c0_6 = arith.constant 0 : index
      %12 = vector.load %arg9[%c0, %c0_5, %c0_6] : memref<4x8x1xf32, #tpu.memory_space<vmem>>, vector<1x8x1xf32>
      %13 = vector.shape_cast %12 : vector<1x8x1xf32> to vector<8x1xf32>
      %14 = tpu.reciprocal %13 {approx = true} : vector<8x1xf32> -> vector<8x1xf32>
      %c0_7 = arith.constant 0 : index
      %c0_8 = arith.constant 0 : index
      %c0_9 = arith.constant 0 : index
      %15 = vector.load %arg10[%c0_7, %c0_8, %c0_9] : memref<4x8x8xf32, #tpu.memory_space<vmem>>, vector<1x8x8xf32>
      %16 = vector.shape_cast %15 : vector<1x8x8xf32> to vector<8x8xf32>
      %17 = vector.broadcast %14 : vector<8x1xf32> to vector<8x8xf32>
      %18 = arith.mulf %16, %17 : vector<8x8xf32>
      %c1 = arith.constant 1 : index
      %c0_10 = arith.constant 0 : index
      %c0_11 = arith.constant 0 : index
      %19 = vector.load %arg9[%c1, %c0_10, %c0_11] : memref<4x8x1xf32, #tpu.memory_space<vmem>>, vector<1x8x1xf32>
      %20 = vector.shape_cast %19 : vector<1x8x1xf32> to vector<8x1xf32>
      %21 = tpu.reciprocal %20 {approx = true} : vector<8x1xf32> -> vector<8x1xf32>
      %c1_12 = arith.constant 1 : index
      %c0_13 = arith.constant 0 : index
      %c0_14 = arith.constant 0 : index
      %22 = vector.load %arg10[%c1_12, %c0_13, %c0_14] : memref<4x8x8xf32, #tpu.memory_space<vmem>>, vector<1x8x8xf32>
      %23 = vector.shape_cast %22 : vector<1x8x8xf32> to vector<8x8xf32>
      %24 = vector.broadcast %21 : vector<8x1xf32> to vector<8x8xf32>
      %25 = arith.mulf %23, %24 : vector<8x8xf32>
      %c2 = arith.constant 2 : index
      %c0_15 = arith.constant 0 : index
      %c0_16 = arith.constant 0 : index
      %26 = vector.load %arg9[%c2, %c0_15, %c0_16] : memref<4x8x1xf32, #tpu.memory_space<vmem>>, vector<1x8x1xf32>
      %27 = vector.shape_cast %26 : vector<1x8x1xf32> to vector<8x1xf32>
      %28 = tpu.reciprocal %27 {approx = true} : vector<8x1xf32> -> vector<8x1xf32>
      %c2_17 = arith.constant 2 : index
      %c0_18 = arith.constant 0 : index
      %c0_19 = arith.constant 0 : index
      %29 = vector.load %arg10[%c2_17, %c0_18, %c0_19] : memref<4x8x8xf32, #tpu.memory_space<vmem>>, vector<1x8x8xf32>
      %30 = vector.shape_cast %29 : vector<1x8x8xf32> to vector<8x8xf32>
      %31 = vector.broadcast %28 : vector<8x1xf32> to vector<8x8xf32>
      %32 = arith.mulf %30, %31 : vector<8x8xf32>
      %c3 = arith.constant 3 : index
      %c0_20 = arith.constant 0 : index
      %c0_21 = arith.constant 0 : index
      %33 = vector.load %arg9[%c3, %c0_20, %c0_21] : memref<4x8x1xf32, #tpu.memory_space<vmem>>, vector<1x8x1xf32>
      %34 = vector.shape_cast %33 : vector<1x8x1xf32> to vector<8x1xf32>
      %35 = tpu.reciprocal %34 {approx = true} : vector<8x1xf32> -> vector<8x1xf32>
      %c3_22 = arith.constant 3 : index
      %c0_23 = arith.constant 0 : index
      %c0_24 = arith.constant 0 : index
      %36 = vector.load %arg10[%c3_22, %c0_23, %c0_24] : memref<4x8x8xf32, #tpu.memory_space<vmem>>, vector<1x8x8xf32>
      %37 = vector.shape_cast %36 : vector<1x8x8xf32> to vector<8x8xf32>
      %38 = vector.broadcast %35 : vector<8x1xf32> to vector<8x8xf32>
      %39 = arith.mulf %37, %38 : vector<8x8xf32>
      %40 = tpu.concatenate %18, %25, %32, %39 in 1 : vector<8x8xf32>, vector<8x8xf32>, vector<8x8xf32>, vector<8x8xf32> -> vector<8x32xf32>
      %41 = arith.truncf %40 : vector<8x32xf32> to vector<8x32xbf16>
      %c0_25 = arith.constant 0 : index
      %c0_26 = arith.constant 0 : index
      %c0_27 = arith.constant 0 : index
      %42 = vector.load %arg7[%c0_25, %c0_26, %c0_27] : memref<1x8x32xbf16, #tpu.memory_space<vmem>>, vector<1x8x32xbf16>
      %43 = vector.shape_cast %42 : vector<1x8x32xbf16> to vector<8x32xbf16>
      %44 = vector.shape_cast %41 : vector<8x32xbf16> to vector<1x8x32xbf16>
      tpu.vector_store %arg7[%c0_25, %c0_26, %c0_27], %44 {strides = array<i32>} : memref<1x8x32xbf16, #tpu.memory_space<vmem>>, vector<1x8x32xbf16>,
    } else {
    }
    return
  }
  func.func @transform_0(%arg0: i32, %arg1: i32, %arg2: i32) -> (i32, i32, i32) {
    %c0_i32 = arith.constant 0 : i32
    %c0_i32_0 = arith.constant 0 : i32
    return %arg0, %arg1, %c0_i32 : i32, i32, i32
  }
  func.func @transform_1(%arg0: i32, %arg1: i32, %arg2: i32) -> (i32, i32, i32) {
    %c0_i32 = arith.constant 0 : i32
    %c0_i32_0 = arith.constant 0 : i32
    return %arg0, %arg2, %c0_i32 : i32, i32, i32
  }
  func.func @transform_2(%arg0: i32, %arg1: i32, %arg2: i32) -> (i32, i32, i32) {
    %c0_i32 = arith.constant 0 : i32
    %c0_i32_0 = arith.constant 0 : i32
    return %arg0, %arg2, %c0_i32 : i32, i32, i32
  }
  func.func @transform_3(%arg0: i32, %arg1: i32, %arg2: i32) -> (i32, i32, i32) {
    %c0_i32 = arith.constant 0 : i32
    %c0_i32_0 = arith.constant 0 : i32
    return %arg0, %c0_i32, %arg2 : i32, i32, i32
  }
  func.func @transform_4(%arg0: i32, %arg1: i32, %arg2: i32) -> (i32, i32, i32) {
    %c0_i32 = arith.constant 0 : i32
    %c0_i32_0 = arith.constant 0 : i32
    return %arg0, %arg1, %c0_i32 : i32, i32, i32
  }
}

module attributes {stable_mosaic.version = 11 : i64} {
  func.func @_matmul_kernel(%arg0: i32, %arg1: i32, %arg2: i32, %arg3: memref<16x32xbf16, #tpu.memory_space<vmem>>, %arg4: memref<32x32xbf16, #tpu.memory_space<vmem>>, %arg5: memref<1x32xf32, #tpu.memory_space<vmem>>, %arg6: memref<16x32xf32, #tpu.memory_space<vmem>>, %arg7: memref<16x32xf32, #tpu.memory_space<vmem>>) attributes {dimension_semantics = [#tpu.dimension_semantics<parallel>, #tpu.dimension_semantics<parallel>, #tpu.dimension_semantics<arbitrary>], iteration_bounds = array<i64: 1, 1, 1>, scalar_prefetch = 0 : i64, scratch_operands = 0 : i64, tpu.core_type = #tpu.core_type<tc>, window_params = [{transform_indices = @transform_0, window_bounds = array<i64: 16, 32>}, {transform_indices = @transform_1, window_bounds = array<i64: 32, 32>}, {transform_indices = @transform_2, window_bounds = array<i64: 1, 32>}, {transform_indices = @transform_3, window_bounds = array<i64: 16, 32>}, {transform_indices = @transform_4, window_bounds = array<i64: 16, 32>}]} {
    %c0_i32 = arith.constant 0 : i32
    %0 = arith.cmpi eq, %arg2, %c0_i32 : i32
    %1 = arith.extui %0 : i1 to i32
    %c0_i32_0 = arith.constant 0 : i32
    %2 = arith.cmpi ne, %1, %c0_i32_0 : i32
    scf.if %2 {
      %c0_8 = arith.constant 0 : index
      %c0_9 = arith.constant 0 : index
      %9 = vector.load %arg6[%c0_8, %c0_9] : memref<16x32xf32, #tpu.memory_space<vmem>>, vector<16x32xf32>
      %c0_10 = arith.constant 0 : index
      %c0_11 = arith.constant 0 : index
      %10 = vector.load %arg5[%c0_10, %c0_11] : memref<1x32xf32, #tpu.memory_space<vmem>>, vector<1x32xf32>
      %11 = vector.broadcast %10 : vector<1x32xf32> to vector<16x32xf32>
      %12 = arith.addf %9, %11 : vector<16x32xf32>
      %c0_12 = arith.constant 0 : index
      %c0_13 = arith.constant 0 : index
      %13 = vector.load %arg7[%c0_12, %c0_13] : memref<16x32xf32, #tpu.memory_space<vmem>>, vector<16x32xf32>
      tpu.vector_store %arg7[%c0_12, %c0_13], %12 {strides = array<i32>} : memref<16x32xf32, #tpu.memory_space<vmem>>, vector<16x32xf32>,
    } else {
    }
    %c0 = arith.constant 0 : index
    %c0_1 = arith.constant 0 : index
    %3 = vector.load %arg3[%c0, %c0_1] : memref<16x32xbf16, #tpu.memory_space<vmem>>, vector<16x32xbf16>
    %c0_2 = arith.constant 0 : index
    %c0_3 = arith.constant 0 : index
    %4 = vector.load %arg4[%c0_2, %c0_3] : memref<32x32xbf16, #tpu.memory_space<vmem>>, vector<32x32xbf16>
    %c0_4 = arith.constant 0 : index
    %c0_5 = arith.constant 0 : index
    %5 = vector.load %arg7[%c0_4, %c0_5] : memref<16x32xf32, #tpu.memory_space<vmem>>, vector<16x32xf32>
    %cst = arith.constant dense<0.000000e+00> : vector<16x32xf32>
    %6 = tpu.matmul %3, %4, %cst {dimension_numbers = #tpu.dot_dimension_numbers<[1], [0], [0], [1], [0, 0, 1, 1], [], []>} : vector<16x32xbf16>, vector<32x32xbf16>, vector<16x32xf32> -> vector<16x32xf32>
    %7 = arith.addf %5, %6 : vector<16x32xf32>
    %c0_6 = arith.constant 0 : index
    %c0_7 = arith.constant 0 : index
    %8 = vector.load %arg7[%c0_6, %c0_7] : memref<16x32xf32, #tpu.memory_space<vmem>>, vector<16x32xf32>
    tpu.vector_store %arg7[%c0_6, %c0_7], %7 {strides = array<i32>} : memref<16x32xf32, #tpu.memory_space<vmem>>, vector<16x32xf32>,
    return
  }
  func.func @transform_0(%arg0: i32, %arg1: i32, %arg2: i32) -> (i32, i32) {
    %c0_i32 = arith.constant 0 : i32
    return %arg0, %arg2 : i32, i32
  }
  func.func @transform_1(%arg0: i32, %arg1: i32, %arg2: i32) -> (i32, i32) {
    %c0_i32 = arith.constant 0 : i32
    return %arg2, %arg1 : i32, i32
  }
  func.func @transform_2(%arg0: i32, %arg1: i32, %arg2: i32) -> (i32, i32) {
    %c0_i32 = arith.constant 0 : i32
    %c0_i32_0 = arith.constant 0 : i32
    return %c0_i32, %arg1 : i32, i32
  }
  func.func @transform_3(%arg0: i32, %arg1: i32, %arg2: i32) -> (i32, i32) {
    %c0_i32 = arith.constant 0 : i32
    return %arg0, %arg1 : i32, i32
  }
  func.func @transform_4(%arg0: i32, %arg1: i32, %arg2: i32) -> (i32, i32) {
    %c0_i32 = arith.constant 0 : i32
    return %arg0, %arg1 : i32, i32
  }
}

module attributes {stable_mosaic.version = 11 : i64} {
  func.func @_ffn_kernel(%arg0: i32, %arg1: i32, %arg2: memref<16x32xf32, #tpu.memory_space<vmem>>, %arg3: memref<1x32xf32, #tpu.memory_space<vmem>>, %arg4: memref<1x32xf32, #tpu.memory_space<vmem>>, %arg5: memref<32x128xbf16, #tpu.memory_space<vmem>>, %arg6: memref<1x128xf32, #tpu.memory_space<vmem>>, %arg7: memref<128x32xbf16, #tpu.memory_space<vmem>>, %arg8: memref<1x32xf32, #tpu.memory_space<vmem>>, %arg9: memref<16x32xf32, #tpu.memory_space<vmem>>, %arg10: memref<16x32xbf16, #tpu.memory_space<vmem>>) attributes {dimension_semantics = [#tpu.dimension_semantics<parallel>, #tpu.dimension_semantics<arbitrary>], iteration_bounds = array<i64: 1, 1>, scalar_prefetch = 0 : i64, scratch_operands = 1 : i64, tpu.core_type = #tpu.core_type<tc>, window_params = [{transform_indices = @transform_0, window_bounds = array<i64: 16, 32>}, {pipeline_mode = #tpu.pipeline_mode<synchronous>, transform_indices = @transform_1, window_bounds = array<i64: 1, 32>}, {pipeline_mode = #tpu.pipeline_mode<synchronous>, transform_indices = @transform_2, window_bounds = array<i64: 1, 32>}, {transform_indices = @transform_3, window_bounds = array<i64: 32, 128>}, {transform_indices = @transform_4, window_bounds = array<i64: 1, 128>}, {transform_indices = @transform_5, window_bounds = array<i64: 128, 32>}, {pipeline_mode = #tpu.pipeline_mode<synchronous>, transform_indices = @transform_6, window_bounds = array<i64: 1, 32>}, {transform_indices = @transform_7, window_bounds = array<i64: 16, 32>}]} {
    %c0_i32 = arith.constant 0 : i32
    %0 = arith.cmpi eq, %arg1, %c0_i32 : i32
    %1 = arith.extui %0 : i1 to i32
    %c0_i32_0 = arith.constant 0 : i32
    %2 = arith.cmpi ne, %1, %c0_i32_0 : i32
    scf.if %2 {
      %c0_14 = arith.constant 0 : index
      %c0_15 = arith.constant 0 : index
      %17 = vector.load %arg2[%c0_14, %c0_15] : memref<16x32xf32, #tpu.memory_space<vmem>>, vector<16x32xf32>
      %cst_16 = arith.constant dense<0.000000e+00> : vector<16xf32>
      %18 = vector.multi_reduction <add>, %17, %cst_16 [1] : vector<16x32xf32> to vector<16xf32>
      %19 = vector.shape_cast %18 : vector<16xf32> to vector<16x1xf32>
      %cst_17 = arith.constant 3.200000e+01 : f32
      %20 = vector.broadcast %cst_17 : f32 to vector<16x1xf32>
      %21 = arith.divf %19, %20 : vector<16x1xf32>
      %22 = vector.broadcast %21 : vector<16x1xf32> to vector<16x32xf32>
      %23 = arith.subf %17, %22 : vector<16x32xf32>
      %24 = vector.broadcast %21 : vector<16x1xf32> to vector<16x32xf32>
      %25 = arith.subf %17, %24 : vector<16x32xf32>
      %26 = arith.mulf %23, %25 : vector<16x32xf32>
      %cst_18 = arith.constant dense<0.000000e+00> : vector<16xf32>
      %27 = vector.multi_reduction <add>, %26, %cst_18 [1] : vector<16x32xf32> to vector<16xf32>
      %28 = vector.shape_cast %27 : vector<16xf32> to vector<16x1xf32>
      %cst_19 = arith.constant 3.200000e+01 : f32
      %29 = vector.broadcast %cst_19 : f32 to vector<16x1xf32>
      %30 = arith.divf %28, %29 : vector<16x1xf32>
      %31 = vector.broadcast %21 : vector<16x1xf32> to vector<16x32xf32>
      %32 = arith.subf %17, %31 : vector<16x32xf32>
      %cst_20 = arith.constant 9.99999974E-6 : f32
      %33 = vector.broadcast %cst_20 : f32 to vector<16x1xf32>
      %34 = arith.addf %30, %33 : vector<16x1xf32>
      %35 = math.rsqrt %34 : vector<16x1xf32>
      %36 = vector.broadcast %35 : vector<16x1xf32> to vector<16x32xf32>
      %37 = arith.mulf %32, %36 : vector<16x32xf32>
      %c0_21 = arith.constant 0 : index
      %c0_22 = arith.constant 0 : index
      %38 = vector.load %arg3[%c0_21, %c0_22] : memref<1x32xf32, #tpu.memory_space<vmem>>, vector<1x32xf32>
      %39 = vector.broadcast %38 : vector<1x32xf32> to vector<16x32xf32>
      %40 = arith.mulf %37, %39 : vector<16x32xf32>
      %c0_23 = arith.constant 0 : index
      %c0_24 = arith.constant 0 : index
      %41 = vector.load %arg4[%c0_23, %c0_24] : memref<1x32xf32, #tpu.memory_space<vmem>>, vector<1x32xf32>
      %42 = vector.broadcast %41 : vector<1x32xf32> to vector<16x32xf32>
      %43 = arith.addf %40, %42 : vector<16x32xf32>
      %44 = arith.truncf %43 : vector<16x32xf32> to vector<16x32xbf16>
      %c0_25 = arith.constant 0 : index
      %c0_26 = arith.constant 0 : index
      %45 = vector.load %arg10[%c0_25, %c0_26] : memref<16x32xbf16, #tpu.memory_space<vmem>>, vector<16x32xbf16>
      tpu.vector_store %arg10[%c0_25, %c0_26], %44 {strides = array<i32>} : memref<16x32xbf16, #tpu.memory_space<vmem>>, vector<16x32xbf16>,
      %c0_27 = arith.constant 0 : index
      %c0_28 = arith.constant 0 : index
      %46 = vector.load %arg8[%c0_27, %c0_28] : memref<1x32xf32, #tpu.memory_space<vmem>>, vector<1x32xf32>
      %47 = vector.broadcast %46 : vector<1x32xf32> to vector<16x32xf32>
      %48 = arith.addf %17, %47 : vector<16x32xf32>
      %c0_29 = arith.constant 0 : index
      %c0_30 = arith.constant 0 : index
      %49 = vector.load %arg9[%c0_29, %c0_30] : memref<16x32xf32, #tpu.memory_space<vmem>>, vector<16x32xf32>
      tpu.vector_store %arg9[%c0_29, %c0_30], %48 {strides = array<i32>} : memref<16x32xf32, #tpu.memory_space<vmem>>, vector<16x32xf32>,
    } else {
    }
    %c0 = arith.constant 0 : index
    %c0_1 = arith.constant 0 : index
    %3 = vector.load %arg10[%c0, %c0_1] : memref<16x32xbf16, #tpu.memory_space<vmem>>, vector<16x32xbf16>
    %c0_2 = arith.constant 0 : index
    %c0_3 = arith.constant 0 : index
    %4 = vector.load %arg5[%c0_2, %c0_3] : memref<32x128xbf16, #tpu.memory_space<vmem>>, vector<32x128xbf16>
    %cst = arith.constant dense<0.000000e+00> : vector<16x128xf32>
    %5 = tpu.matmul %3, %4, %cst {dimension_numbers = #tpu.dot_dimension_numbers<[1], [0], [0], [1], [0, 0, 1, 1], [], []>} : vector<16x32xbf16>, vector<32x128xbf16>, vector<16x128xf32> -> vector<16x128xf32>
    %c0_4 = arith.constant 0 : index
    %c0_5 = arith.constant 0 : index
    %6 = vector.load %arg6[%c0_4, %c0_5] : memref<1x128xf32, #tpu.memory_space<vmem>>, vector<1x128xf32>
    %7 = vector.broadcast %6 : vector<1x128xf32> to vector<16x128xf32>
    %8 = arith.addf %5, %7 : vector<16x128xf32>
    %cst_6 = arith.constant 0.000000e+00 : f32
    %9 = vector.broadcast %cst_6 : f32 to vector<16x128xf32>
    %10 = arith.maximumf %8, %9 : vector<16x128xf32>
    %c0_7 = arith.constant 0 : index
    %c0_8 = arith.constant 0 : index
    %11 = vector.load %arg9[%c0_7, %c0_8] : memref<16x32xf32, #tpu.memory_space<vmem>>, vector<16x32xf32>
    %12 = arith.truncf %10 : vector<16x128xf32> to vector<16x128xbf16>
    %c0_9 = arith.constant 0 : index
    %c0_10 = arith.constant 0 : index
    %13 = vector.load %arg7[%c0_9, %c0_10] : memref<128x32xbf16, #tpu.memory_space<vmem>>, vector<128x32xbf16>
    %cst_11 = arith.constant dense<0.000000e+00> : vector<16x32xf32>
    %14 = tpu.matmul %12, %13, %cst_11 {dimension_numbers = #tpu.dot_dimension_numbers<[1], [0], [0], [1], [0, 0, 1, 1], [], []>} : vector<16x128xbf16>, vector<128x32xbf16>, vector<16x32xf32> -> vector<16x32xf32>
    %15 = arith.addf %11, %14 : vector<16x32xf32>
    %c0_12 = arith.constant 0 : index
    %c0_13 = arith.constant 0 : index
    %16 = vector.load %arg9[%c0_12, %c0_13] : memref<16x32xf32, #tpu.memory_space<vmem>>, vector<16x32xf32>
    tpu.vector_store %arg9[%c0_12, %c0_13], %15 {strides = array<i32>} : memref<16x32xf32, #tpu.memory_space<vmem>>, vector<16x32xf32>,
    return
  }
  func.func @transform_0(%arg0: i32, %arg1: i32) -> (i32, i32) {
    %c0_i32 = arith.constant 0 : i32
    %c0_i32_0 = arith.constant 0 : i32
    return %arg0, %c0_i32 : i32, i32
  }
  func.func @transform_1(%arg0: i32, %arg1: i32) -> (i32, i32) {
    %c0_i32 = arith.constant 0 : i32
    %c0_i32_0 = arith.constant 0 : i32
    %c0_i32_1 = arith.constant 0 : i32
    return %c0_i32, %c0_i32_0 : i32, i32
  }
  func.func @transform_2(%arg0: i32, %arg1: i32) -> (i32, i32) {
    %c0_i32 = arith.constant 0 : i32
    %c0_i32_0 = arith.constant 0 : i32
    %c0_i32_1 = arith.constant 0 : i32
    return %c0_i32, %c0_i32_0 : i32, i32
  }
  func.func @transform_3(%arg0: i32, %arg1: i32) -> (i32, i32) {
    %c0_i32 = arith.constant 0 : i32
    %c0_i32_0 = arith.constant 0 : i32
    return %c0_i32, %arg1 : i32, i32
  }
  func.func @transform_4(%arg0: i32, %arg1: i32) -> (i32, i32) {
    %c0_i32 = arith.constant 0 : i32
    %c0_i32_0 = arith.constant 0 : i32
    return %c0_i32, %arg1 : i32, i32
  }
  func.func @transform_5(%arg0: i32, %arg1: i32) -> (i32, i32) {
    %c0_i32 = arith.constant 0 : i32
    %c0_i32_0 = arith.constant 0 : i32
    return %arg1, %c0_i32 : i32, i32
  }
  func.func @transform_6(%arg0: i32, %arg1: i32) -> (i32, i32) {
    %c0_i32 = arith.constant 0 : i32
    %c0_i32_0 = arith.constant 0 : i32
    %c0_i32_1 = arith.constant 0 : i32
    return %c0_i32, %c0_i32_0 : i32, i32
  }
  func.func @transform_7(%arg0: i32, %arg1: i32) -> (i32, i32) {
    %c0_i32 = arith.constant 0 : i32
    %c0_i32_0 = arith.constant 0 : i32
    return %arg0, %c0_i32 : i32, i32
  }
}

module attributes {stable_mosaic.version = 11 : i64} {
  func.func @_matmul_kernel(%arg0: i32, %arg1: i32, %arg2: i32, %arg3: memref<16x32xf32, #tpu.memory_space<vmem>>, %arg4: memref<32x128xbf16, #tpu.memory_space<vmem>>, %arg5: memref<1x128xf32, #tpu.memory_space<vmem>>, %arg6: memref<16x128xf32, #tpu.memory_space<vmem>>) attributes {dimension_semantics = [#tpu.dimension_semantics<parallel>, #tpu.dimension_semantics<parallel>, #tpu.dimension_semantics<arbitrary>], iteration_bounds = array<i64: 1, 1, 1>, scalar_prefetch = 0 : i64, scratch_operands = 0 : i64, tpu.core_type = #tpu.core_type<tc>, window_params = [{transform_indices = @transform_0, window_bounds = array<i64: 16, 32>}, {transform_indices = @transform_1, window_bounds = array<i64: 32, 128>}, {transform_indices = @transform_2, window_bounds = array<i64: 1, 128>}, {transform_indices = @transform_3, window_bounds = array<i64: 16, 128>}]} {
    %c0_i32 = arith.constant 0 : i32
    %0 = arith.cmpi eq, %arg2, %c0_i32 : i32
    %1 = arith.extui %0 : i1 to i32
    %c0_i32_0 = arith.constant 0 : i32
    %2 = arith.cmpi ne, %1, %c0_i32_0 : i32
    scf.if %2 {
      %c0_8 = arith.constant 0 : index
      %c0_9 = arith.constant 0 : index
      %10 = vector.load %arg5[%c0_8, %c0_9] : memref<1x128xf32, #tpu.memory_space<vmem>>, vector<1x128xf32>
      %11 = vector.shape_cast %10 : vector<1x128xf32> to vector<1x128xf32>
      %12 = vector.broadcast %11 : vector<1x128xf32> to vector<16x128xf32>
      %c0_10 = arith.constant 0 : index
      %c0_11 = arith.constant 0 : index
      %13 = vector.load %arg6[%c0_10, %c0_11] : memref<16x128xf32, #tpu.memory_space<vmem>>, vector<16x128xf32>
      tpu.vector_store %arg6[%c0_10, %c0_11], %12 {strides = array<i32>} : memref<16x128xf32, #tpu.memory_space<vmem>>, vector<16x128xf32>,
    } else {
    }
    %c0 = arith.constant 0 : index
    %c0_1 = arith.constant 0 : index
    %3 = vector.load %arg3[%c0, %c0_1] : memref<16x32xf32, #tpu.memory_space<vmem>>, vector<16x32xf32>
    %4 = arith.truncf %3 : vector<16x32xf32> to vector<16x32xbf16>
    %c0_2 = arith.constant 0 : index
    %c0_3 = arith.constant 0 : index
    %5 = vector.load %arg4[%c0_2, %c0_3] : memref<32x128xbf16, #tpu.memory_space<vmem>>, vector<32x128xbf16>
    %c0_4 = arith.constant 0 : index
    %c0_5 = arith.constant 0 : index
    %6 = vector.load %arg6[%c0_4, %c0_5] : memref<16x128xf32, #tpu.memory_space<vmem>>, vector<16x128xf32>
    %cst = arith.constant dense<0.000000e+00> : vector<16x128xf32>
    %7 = tpu.matmul %4, %5, %cst {dimension_numbers = #tpu.dot_dimension_numbers<[1], [0], [0], [1], [0, 0, 1, 1], [], []>} : vector<16x32xbf16>, vector<32x128xbf16>, vector<16x128xf32> -> vector<16x128xf32>
    %8 = arith.addf %6, %7 : vector<16x128xf32>
    %c0_6 = arith.constant 0 : index
    %c0_7 = arith.constant 0 : index
    %9 = vector.load %arg6[%c0_6, %c0_7] : memref<16x128xf32, #tpu.memory_space<vmem>>, vector<16x128xf32>
    tpu.vector_store %arg6[%c0_6, %c0_7], %8 {strides = array<i32>} : memref<16x128xf32, #tpu.memory_space<vmem>>, vector<16x128xf32>,
    return
  }
  func.func @transform_0(%arg0: i32, %arg1: i32, %arg2: i32) -> (i32, i32) {
    %c0_i32 = arith.constant 0 : i32
    return %arg0, %arg2 : i32, i32
  }
  func.func @transform_1(%arg0: i32, %arg1: i32, %arg2: i32) -> (i32, i32) {
    %c0_i32 = arith.constant 0 : i32
    return %arg2, %arg1 : i32, i32
  }
  func.func @transform_2(%arg0: i32, %arg1: i32, %arg2: i32) -> (i32, i32) {
    %c0_i32 = arith.constant 0 : i32
    %c0_i32_0 = arith.constant 0 : i32
    return %c0_i32, %arg1 : i32, i32
  }
  func.func @transform_3(%arg0: i32, %arg1: i32, %arg2: i32) -> (i32, i32) {
    %c0_i32 = arith.constant 0 : i32
    return %arg0, %arg1 : i32, i32
  }
}

</mosaic_0001>

<llo_original>
// kernel: transformer_lm_forward.11
$region0: #{transformer_lm_forward.11}
  #allocation0 [shape = 'u32[]', space=smem, size = 0x4, offset = 0x4, fixed_abs, tag = 'smem constant byte address 0x4 - core index']
  #allocation1 [shape = 'u32[72,128]{1,0:T(1,128)}', space=vmem, size = 0x9000, scoped, tag = 'internal scratch']
  %s0 = inlined_call_operand.vmem [shape: bf16[16,32], index: 0, kind: input, shape index: {}]
  %s1 = inlined_call_operand.vmem [shape: bf16[32,32], index: 1, kind: input, shape index: {}]
  %s2 = inlined_call_operand.vmem [shape: f32[1,32], index: 2, kind: input, shape index: {}]
  %s3 = inlined_call_operand.vmem [shape: f32[16,32], index: 3, kind: input, shape index: {}]
  %s4 = inlined_call_operand.vmem [shape: f32[16,32], index: 4, kind: output, shape index: {}]
  %s5 = sld [smem:[#allocation0]]
  $region30: #{transformer_lm_forward.11} parent=0
    _
  %s7 = ssub.s32 1, %s5
  %s8 = scalar_select 0, %s7, %s5
  // Predicated region
  $region2: #{transformer_lm_forward.11} parent=0 // pred_check
    _
  $region3: #{transformer_lm_forward.11} parent=0 // pred_check_branch
    %10 = sbr.rel (0) target = $region5
  $region4: #{transformer_lm_forward.11} parent=0 // pred_region
    _
  $region5: #{transformer_lm_forward.11} parent=0 // pred_fallthru
    _
  // Predicated region
  $region6: #{transformer_lm_forward.11} parent=0 // pred_check
    _
  $region7: #{transformer_lm_forward.11} parent=0 // pred_check_branch
    %12 = sbr.rel (0) target = $region9
  $region8: #{transformer_lm_forward.11} parent=0 // pred_region
    _
  $region9: #{transformer_lm_forward.11} parent=0 // pred_fallthru
    _
  // Predicated region
  $region10: #{transformer_lm_forward.11} parent=0 // pred_check
    _
  $region11: #{transformer_lm_forward.11} parent=0 // pred_check_branch
    %14 = sbr.rel (0) target = $region13
  $region12: #{transformer_lm_forward.11} parent=0 // pred_region
    _
  $region13: #{transformer_lm_forward.11} parent=0 // pred_fallthru
    _
  // Predicated region
  $region14: #{transformer_lm_forward.11} parent=0 // pred_check
    _
  $region15: #{transformer_lm_forward.11} parent=0 // pred_check_branch
    %16 = sbr.rel (0) target = $region17
  $region16: #{transformer_lm_forward.11} parent=0 // pred_region
    _
  $region17: #{transformer_lm_forward.11} parent=0 // pred_fallthru
    _
  %p18 = scmp.eq.s32.totalorder 0, 0
  // Predicated region
  $region18: #{transformer_lm_forward.11} parent=0 // pred_check
    %p19 = pneg %p18
  $region19: #{transformer_lm_forward.11} parent=0 // pred_check_branch
    %21 = sbr.rel (%p19) target = $region21
  $region20: #{transformer_lm_forward.11} parent=0 // pred_region
    %v22 = vld [vmem:[%s3] sm:$0xff]
    %v23 = vld [vmem:[%s3 + $0x8] sm:$0xff]
    %v24 = vld [vmem:[%s2] sm:$0x1]
    %v26 = vperm.slane %v24, 0
    %v28 = vadd.f32 %v22, %v26
    %v29 = vadd.f32 %v23, %v26
    %vm30 = vcmask 261120
    %31 = vst.msk [vmem:[%s4] sm:$0xff] %vm30, %v28
    %32 = vst.msk [vmem:[%s4 + $0x8] sm:$0xff] %vm30, %v29
  $region21: #{transformer_lm_forward.11} parent=0 // pred_fallthru
    _
  %v33 = vld [vmem:[%s0] sm:$0xf]
  %v34 = vld [vmem:[%s0 + $0x4] sm:$0xf]
  %v35 = vld [vmem:[%s1] sm:$0xf]
  %v36 = vld [vmem:[%s1 + $0x4] sm:$0xf]
  %v37 = vld [vmem:[%s1 + $0x8] sm:$0xf]
  %v38 = vld [vmem:[%s1 + $0xc] sm:$0xf]
  %v39 = vld [vmem:[%s4] sm:$0xff]
  %v40 = vld [vmem:[%s4 + $0x8] sm:$0xff]
  %v43 = vunpack.c.l.b16 %v33
  %v44 = vunpack.c.l.b16 %v34
  %v45 = vpack.c.b16 %v44, %v43
  %v50 = vunpack.c.l.b16 %v35
  %v51 = vunpack.c.l.b16 %v36
  %v52 = vunpack.c.l.b16 %v37
  %v53 = vunpack.c.l.b16 %v38
  %v54 = vpack.c.b16 %v51, %v50
  %v55 = vpack.c.b16 %v53, %v52
  %vm58 = vcmask 261120
  %v60 = vsel %vm58, %v45, 0
  %62 = vmatpush.bf16.msra.mxu0 0
  %63 = vmatpush.bf16.msra.mxu0 0
  %64 = vmatpush.bf16.msra.mxu0 0
  %65 = vmatpush.bf16.msra.mxu0 0
  %66 = vmatpush.bf16.msra.mxu0 0
  %67 = vmatpush.bf16.msra.mxu0 0
  %68 = vmatpush.bf16.msra.mxu0 %v55
  %69 = vmatpush.bf16.msra.mxu0 %v54
  %70 = vmatmul.bf16.gmra.mxu0 %v60
  %v71 = vpop.f32.mrf.mxu0
  %v72 = vadd.f32 0.0, %v71
  %v73 = vpop.f32.mrf.mxu0
  %v74 = vadd.f32 0.0, %v73
  %75 = vdwg.mxu0
  %v76 = vadd.f32 %v39, %v72
  %v77 = vadd.f32 %v40, %v74
  %78 = vst.msk [vmem:[%s4] sm:$0xff] %vm58, %v76
  %79 = vst.msk [vmem:[%s4 + $0x8] sm:$0xff] %vm58, %v77
  // Predicated region
  $region22: #{transformer_lm_forward.11} parent=0 // pred_check
    _
  $region23: #{transformer_lm_forward.11} parent=0 // pred_check_branch
    %81 = sbr.rel (0) target = $region25
  $region24: #{transformer_lm_forward.11} parent=0 // pred_region
    _
  $region25: #{transformer_lm_forward.11} parent=0 // pred_fallthru
    _
  // Predicated region
  $region26: #{transformer_lm_forward.11} parent=0 // pred_check
    _
  $region27: #{transformer_lm_forward.11} parent=0 // pred_check_branch
    %83 = sbr.rel (0) target = $region29
  $region28: #{transformer_lm_forward.11} parent=0 // pred_region
    _
  $region29: #{transformer_lm_forward.11} parent=0 // pred_fallthru
    _

// kernel: transformer_lm_forward.9
$region0: #{transformer_lm_forward.9}
  #allocation0 [shape = 'u32[]', space=smem, size = 0x4, offset = 0x4, fixed_abs, tag = 'smem constant byte address 0x4 - core index']
  #allocation1 [shape = 'u32[72,128]{1,0:T(1,128)}', space=vmem, size = 0x9000, scoped, tag = 'internal scratch']
  #allocation2 [shape = 'bf16[16,32]{1,0:T(8,128)(2,1)}', space=vmem, size = 0x1000, scoped, tag = 'scratch operand']
  %s0 = inlined_call_operand.vmem [shape: f32[16,32], index: 0, kind: input, shape index: {}]
  %s1 = inlined_call_operand.vmem [shape: f32[1,32], index: 1, kind: input, shape index: {}]
  %s2 = inlined_call_operand.vmem [shape: f32[1,32], index: 2, kind: input, shape index: {}]
  %s3 = inlined_call_operand.vmem [shape: bf16[32,128], index: 3, kind: input, shape index: {}]
  %s4 = inlined_call_operand.vmem [shape: bf16[16,128], index: 4, kind: output, shape index: {}]
  %s5 = sld [smem:[#allocation0]]
  $region30: #{transformer_lm_forward.9} parent=0
    _
  %s7 = ssub.s32 1, %s5
  %s8 = scalar_select 0, %s7, %s5
  // Predicated region
  $region2: #{transformer_lm_forward.9} parent=0 // pred_check
    _
  $region3: #{transformer_lm_forward.9} parent=0 // pred_check_branch
    %10 = sbr.rel (0) target = $region5
  $region4: #{transformer_lm_forward.9} parent=0 // pred_region
    _
  $region5: #{transformer_lm_forward.9} parent=0 // pred_fallthru
    _
  // Predicated region
  $region6: #{transformer_lm_forward.9} parent=0 // pred_check
    _
  $region7: #{transformer_lm_forward.9} parent=0 // pred_check_branch
    %12 = sbr.rel (0) target = $region9
  $region8: #{transformer_lm_forward.9} parent=0 // pred_region
    _
  $region9: #{transformer_lm_forward.9} parent=0 // pred_fallthru
    _
  // Predicated region
  $region10: #{transformer_lm_forward.9} parent=0 // pred_check
    _
  $region11: #{transformer_lm_forward.9} parent=0 // pred_check_branch
    %14 = sbr.rel (0) target = $region13
  $region12: #{transformer_lm_forward.9} parent=0 // pred_region
    _
  $region13: #{transformer_lm_forward.9} parent=0 // pred_fallthru
    _
  // Predicated region
  $region14: #{transformer_lm_forward.9} parent=0 // pred_check
    _
  $region15: #{transformer_lm_forward.9} parent=0 // pred_check_branch
    %16 = sbr.rel (0) target = $region17
  $region16: #{transformer_lm_forward.9} parent=0 // pred_region
    _
  $region17: #{transformer_lm_forward.9} parent=0 // pred_fallthru
    _
  %p18 = scmp.eq.s32.totalorder 0, 0
  // Predicated region
  $region18: #{transformer_lm_forward.9} parent=0 // pred_check
    %p19 = pneg %p18
  $region19: #{transformer_lm_forward.9} parent=0 // pred_check_branch
    %21 = sbr.rel (%p19) target = $region21
  $region20: #{transformer_lm_forward.9} parent=0 // pred_region
    %v22 = vld [vmem:[%s0] sm:$0xff]
    %v23 = vld [vmem:[%s0 + $0x8] sm:$0xff]
    %vm24 = vcmask 261120
    %v25 = vsel %vm24, %v22, 0.0
    %26 = vadd.xlane.f32.xlu0 %v25
    %v27 = vpop.xlane.xlu0 %26
    %v28 = vsel %vm24, %v23, 0.0
    %29 = vadd.xlane.f32.xlu0 %v28
    %v30 = vpop.xlane.xlu0 %29
    %v31 = vrcp.pop 32.0
    %v32 = vmul.f32 32.0, %v31
    %v33 = vsub.f32 1.0, %v32
    %v34 = vmul.f32 %v31, %v33
    %v35 = vadd.f32 %v31, %v34
    %vm36 = vweird.f32 %v31
    %v37 = vsel %vm36, %v31, %v35
    %v38 = vmul.f32 %v27, %v37
    %v39 = vmul.f32 %v30, %v37
    %v40 = vsub.f32 %v22, %v38
    %v41 = vsub.f32 %v23, %v39
    %v42 = vmul.f32 %v40, %v40
    %v43 = vmul.f32 %v41, %v41
    %v44 = vsel %vm24, %v42, 0.0
    %45 = vadd.xlane.f32.xlu0 %v44
    %v46 = vpop.xlane.xlu0 %45
    %v47 = vsel %vm24, %v43, 0.0
    %48 = vadd.xlane.f32.xlu0 %v47
    %v49 = vpop.xlane.xlu0 %48
    %v50 = vmul.f32 %v46, %v37
    %v51 = vmul.f32 %v49, %v37
    %v52 = vadd.f32 %v50, 1e-05
    %v53 = vadd.f32 %v51, 1e-05
    %v54 = vrsqrt.pop %v52
    %v55 = vmul.f32 %v54, %v52
    %v56 = vmul.f32 %v55, %v54
    %v57 = vmul.f32 0.5, %v56
    %v58 = vsub.f32 1.5, %v57
    %v59 = vmul.f32 %v54, %v58
    %vm60 = vweird.f32 %v52
    %vm61 = vweird.f32 %v54
    %vm62 = vmor %vm60, %vm61
    %v63 = vsel %vm62, %v54, %v59
    %v64 = vrsqrt.pop %v53
    %v65 = vmul.f32 %v64, %v53
    %v66 = vmul.f32 %v65, %v64
    %v67 = vmul.f32 0.5, %v66
    %v68 = vsub.f32 1.5, %v67
    %v69 = vmul.f32 %v64, %v68
    %vm70 = vweird.f32 %v53
    %vm71 = vweird.f32 %v64
    %vm72 = vmor %vm70, %vm71
    %v73 = vsel %vm72, %v64, %v69
    %v74 = vmul.f32 %v40, %v63
    %v75 = vmul.f32 %v41, %v73
    %v76 = vld [vmem:[%s1] sm:$0x1]
    %v78 = vperm.slane %v76, 0
    %v80 = vmul.f32 %v74, %v78
    %v81 = vmul.f32 %v75, %v78
    %v82 = vld [vmem:[%s2] sm:$0x1]
    %v84 = vperm.slane %v82, 0
    %v86 = vadd.f32 %v80, %v84
    %v87 = vadd.f32 %v81, %v84
    %v88 = vpack.c.bf16 %v86, %v86
    %v89 = vpack.c.bf16 %v87, %v87
    %vm90 = vcmask 257024
    %91 = vst.msk [vmem:[#allocation2] sm:$0xf] %vm90, %v88
    %92 = vst.msk [vmem:[#allocation2 + $0x4] sm:$0xf] %vm90, %v89
  $region21: #{transformer_lm_forward.9} parent=0 // pred_fallthru
    _
  %v93 = vld [vmem:[#allocation2] sm:$0xf]
  %v94 = vld [vmem:[#allocation2 + $0x4] sm:$0xf]
  %v95 = vld [vmem:[%s3] sm:$0xf]
  %v96 = vld [vmem:[%s3 + $0x4] sm:$0xf]
  %v97 = vld [vmem:[%s3 + $0x8] sm:$0xf]
  %v98 = vld [vmem:[%s3 + $0xc] sm:$0xf]
  %v101 = vunpack.c.l.b16 %v93
  %v102 = vunpack.c.l.b16 %v94
  %v103 = vpack.c.b16 %v102, %v101
  %v108 = vunpack.c.l.b16 %v95
  %v109 = vunpack.c.l.b16 %v96
  %v110 = vunpack.c.l.b16 %v97
  %v111 = vunpack.c.l.b16 %v98
  %v112 = vpack.c.b16 %v109, %v108
  %v113 = vpack.c.b16 %v111, %v110
  %vm116 = vcmask 261120
  %v118 = vsel %vm116, %v103, 0
  %120 = vmatpush.bf16.msra.mxu0 0
  %121 = vmatpush.bf16.msra.mxu0 0
  %122 = vmatpush.bf16.msra.mxu0 0
  %123 = vmatpush.bf16.msra.mxu0 0
  %124 = vmatpush.bf16.msra.mxu0 0
  %125 = vmatpush.bf16.msra.mxu0 0
  %126 = vmatpush.bf16.msra.mxu0 %v113
  %127 = vmatpush.bf16.msra.mxu0 %v112
  %128 = vmatmul.bf16.gmra.mxu0 %v118
  %v129 = vpop.f32.mrf.mxu0
  %v130 = vadd.f32 0.0, %v129
  %v131 = vpop.f32.mrf.mxu0
  %v132 = vadd.f32 0.0, %v131
  %133 = vdwg.mxu0
  %v134 = vpack.c.bf16 %v130, %v130
  %v135 = vpack.c.bf16 %v132, %v132
  %136 = vst [vmem:[%s4] sm:$0xf] %v134
  %137 = vst [vmem:[%s4 + $0x4] sm:$0xf] %v135
  // Predicated region
  $region22: #{transformer_lm_forward.9} parent=0 // pred_check
    _
  $region23: #{transformer_lm_forward.9} parent=0 // pred_check_branch
    %139 = sbr.rel (0) target = $region25
  $region24: #{transformer_lm_forward.9} parent=0 // pred_region
    _
  $region25: #{transformer_lm_forward.9} parent=0 // pred_fallthru
    _
  // Predicated region
  $region26: #{transformer_lm_forward.9} parent=0 // pred_check
    _
  $region27: #{transformer_lm_forward.9} parent=0 // pred_check_branch
    %141 = sbr.rel (0) target = $region29
  $region28: #{transformer_lm_forward.9} parent=0 // pred_region
    _
  $region29: #{transformer_lm_forward.9} parent=0 // pred_fallthru
    _

// kernel: transformer_lm_forward.12
$region0: #{transformer_lm_forward.12}
  #allocation0 [shape = 'u32[]', space=smem, size = 0x4, offset = 0x4, fixed_abs, tag = 'smem constant byte address 0x4 - core index']
  #allocation1 [shape = 'u32[72,128]{1,0:T(1,128)}', space=vmem, size = 0x9000, scoped, tag = 'internal scratch']
  #allocation2 [shape = 'bf16[16,32]{1,0:T(8,128)(2,1)}', space=vmem, size = 0x1000, scoped, tag = 'scratch operand']
  %s0 = inlined_call_operand.vmem [shape: f32[16,32], index: 0, kind: input, shape index: {}]
  %s1 = inlined_call_operand.vmem [shape: f32[1,32], index: 1, kind: input, shape index: {}]
  %s2 = inlined_call_operand.vmem [shape: f32[1,32], index: 2, kind: input, shape index: {}]
  %s3 = inlined_call_operand.vmem [shape: bf16[32,128], index: 3, kind: input, shape index: {}]
  %s4 = inlined_call_operand.vmem [shape: f32[1,128], index: 4, kind: input, shape index: {}]
  %s5 = inlined_call_operand.vmem [shape: bf16[128,32], index: 5, kind: input, shape index: {}]
  %s6 = inlined_call_operand.vmem [shape: f32[1,32], index: 6, kind: input, shape index: {}]
  %s7 = inlined_call_operand.vmem [shape: f32[16,32], index: 7, kind: output, shape index: {}]
  %s8 = sld [smem:[#allocation0]]
  $region42: #{transformer_lm_forward.12} parent=0
    _
  %s10 = ssub.s32 1, %s8
  %s11 = scalar_select 0, %s10, %s8
  // Predicated region
  $region2: #{transformer_lm_forward.12} parent=0 // pred_check
    _
  $region3: #{transformer_lm_forward.12} parent=0 // pred_check_branch
    %13 = sbr.rel (0) target = $region5
  $region4: #{transformer_lm_forward.12} parent=0 // pred_region
    _
  $region5: #{transformer_lm_forward.12} parent=0 // pred_fallthru
    _
  // Predicated region
  $region6: #{transformer_lm_forward.12} parent=0 // pred_check
    _
  $region7: #{transformer_lm_forward.12} parent=0 // pred_check_branch
    %15 = sbr.rel (0) target = $region9
  $region8: #{transformer_lm_forward.12} parent=0 // pred_region
    _
  $region9: #{transformer_lm_forward.12} parent=0 // pred_fallthru
    _
  // Predicated region
  $region10: #{transformer_lm_forward.12} parent=0 // pred_check
    _
  $region11: #{transformer_lm_forward.12} parent=0 // pred_check_branch
    %17 = sbr.rel (0) target = $region13
  $region12: #{transformer_lm_forward.12} parent=0 // pred_region
    _
  $region13: #{transformer_lm_forward.12} parent=0 // pred_fallthru
    _
  // Predicated region
  $region14: #{transformer_lm_forward.12} parent=0 // pred_check
    _
  $region15: #{transformer_lm_forward.12} parent=0 // pred_check_branch
    %19 = sbr.rel (0) target = $region17
  $region16: #{transformer_lm_forward.12} parent=0 // pred_region
    _
  $region17: #{transformer_lm_forward.12} parent=0 // pred_fallthru
    _
  // Predicated region
  $region18: #{transformer_lm_forward.12} parent=0 // pred_check
    _
  $region19: #{transformer_lm_forward.12} parent=0 // pred_check_branch
    %21 = sbr.rel (0) target = $region21
  $region20: #{transformer_lm_forward.12} parent=0 // pred_region
    _
  $region21: #{transformer_lm_forward.12} parent=0 // pred_fallthru
    _
  // Predicated region
  $region22: #{transformer_lm_forward.12} parent=0 // pred_check
    _
  $region23: #{transformer_lm_forward.12} parent=0 // pred_check_branch
    %23 = sbr.rel (0) target = $region25
  $region24: #{transformer_lm_forward.12} parent=0 // pred_region
    _
  $region25: #{transformer_lm_forward.12} parent=0 // pred_fallthru
    _
  // Predicated region
  $region26: #{transformer_lm_forward.12} parent=0 // pred_check
    _
  $region27: #{transformer_lm_forward.12} parent=0 // pred_check_branch
    %25 = sbr.rel (0) target = $region29
  $region28: #{transformer_lm_forward.12} parent=0 // pred_region
    _
  $region29: #{transformer_lm_forward.12} parent=0 // pred_fallthru
    _
  %p27 = scmp.eq.s32.totalorder 0, 0
  // Predicated region
  $region30: #{transformer_lm_forward.12} parent=0 // pred_check
    %p28 = pneg %p27
  $region31: #{transformer_lm_forward.12} parent=0 // pred_check_branch
    %30 = sbr.rel (%p28) target = $region33
  $region32: #{transformer_lm_forward.12} parent=0 // pred_region
    %v31 = vld [vmem:[%s0] sm:$0xff]
    %v32 = vld [vmem:[%s0 + $0x8] sm:$0xff]
    %vm33 = vcmask 261120
    %v34 = vsel %vm33, %v31, 0.0
    %35 = vadd.xlane.f32.xlu0 %v34
    %v36 = vpop.xlane.xlu0 %35
    %v37 = vsel %vm33, %v32, 0.0
    %38 = vadd.xlane.f32.xlu0 %v37
    %v39 = vpop.xlane.xlu0 %38
    %v40 = vrcp.pop 32.0
    %v41 = vmul.f32 32.0, %v40
    %v42 = vsub.f32 1.0, %v41
    %v43 = vmul.f32 %v40, %v42
    %v44 = vadd.f32 %v40, %v43
    %vm45 = vweird.f32 %v40
    %v46 = vsel %vm45, %v40, %v44
    %v47 = vmul.f32 %v36, %v46
    %v48 = vmul.f32 %v39, %v46
    %v49 = vsub.f32 %v31, %v47
    %v50 = vsub.f32 %v32, %v48
    %v51 = vmul.f32 %v49, %v49
    %v52 = vmul.f32 %v50, %v50
    %v53 = vsel %vm33, %v51, 0.0
    %54 = vadd.xlane.f32.xlu0 %v53
    %v55 = vpop.xlane.xlu0 %54
    %v56 = vsel %vm33, %v52, 0.0
    %57 = vadd.xlane.f32.xlu0 %v56
    %v58 = vpop.xlane.xlu0 %57
    %v59 = vmul.f32 %v55, %v46
    %v60 = vmul.f32 %v58, %v46
    %v61 = vadd.f32 %v59, 1e-05
    %v62 = vadd.f32 %v60, 1e-05
    %v63 = vrsqrt.pop %v61
    %v64 = vmul.f32 %v63, %v61
    %v65 = vmul.f32 %v64, %v63
    %v66 = vmul.f32 0.5, %v65
    %v67 = vsub.f32 1.5, %v66
    %v68 = vmul.f32 %v63, %v67
    %vm69 = vweird.f32 %v61
    %vm70 = vweird.f32 %v63
    %vm71 = vmor %vm69, %vm70
    %v72 = vsel %vm71, %v63, %v68
    %v73 = vrsqrt.pop %v62
    %v74 = vmul.f32 %v73, %v62
    %v75 = vmul.f32 %v74, %v73
    %v76 = vmul.f32 0.5, %v75
    %v77 = vsub.f32 1.5, %v76
    %v78 = vmul.f32 %v73, %v77
    %vm79 = vweird.f32 %v62
    %vm80 = vweird.f32 %v73
    %vm81 = vmor %vm79, %vm80
    %v82 = vsel %vm81, %v73, %v78
    %v83 = vmul.f32 %v49, %v72
    %v84 = vmul.f32 %v50, %v82
    %v85 = vld [vmem:[%s1] sm:$0x1]
    %v87 = vperm.slane %v85, 0
    %v89 = vmul.f32 %v83, %v87
    %v90 = vmul.f32 %v84, %v87
    %v91 = vld [vmem:[%s2] sm:$0x1]
    %v93 = vperm.slane %v91, 0
    %v95 = vadd.f32 %v89, %v93
    %v96 = vadd.f32 %v90, %v93
    %v97 = vpack.c.bf16 %v95, %v95
    %v98 = vpack.c.bf16 %v96, %v96
    %vm99 = vcmask 257024
    %100 = vst.msk [vmem:[#allocation2] sm:$0xf] %vm99, %v97
    %101 = vst.msk [vmem:[#allocation2 + $0x4] sm:$0xf] %vm99, %v98
    %v102 = vld [vmem:[%s6] sm:$0x1]
    %v104 = vperm.slane %v102, 0
    %v106 = vadd.f32 %v31, %v104
    %v107 = vadd.f32 %v32, %v104
    %108 = vst.msk [vmem:[%s7] sm:$0xff] %vm33, %v106
    %109 = vst.msk [vmem:[%s7 + $0x8] sm:$0xff] %vm33, %v107
  $region33: #{transformer_lm_forward.12} parent=0 // pred_fallthru
    _
  %v110 = vld [vmem:[#allocation2] sm:$0xf]
  %v111 = vld [vmem:[#allocation2 + $0x4] sm:$0xf]
  %v112 = vld [vmem:[%s3] sm:$0xf]
  %v113 = vld [vmem:[%s3 + $0x4] sm:$0xf]
  %v114 = vld [vmem:[%s3 + $0x8] sm:$0xf]
  %v115 = vld [vmem:[%s3 + $0xc] sm:$0xf]
  %v116 = vld [vmem:[%s4] sm:$0x1]
  %v118 = vperm.slane %v116, 0
  %v122 = vunpack.c.l.b16 %v110
  %v123 = vunpack.c.l.b16 %v111
  %v124 = vpack.c.b16 %v123, %v122
  %v129 = vunpack.c.l.b16 %v112
  %v130 = vunpack.c.l.b16 %v113
  %v131 = vunpack.c.l.b16 %v114
  %v132 = vunpack.c.l.b16 %v115
  %v133 = vpack.c.b16 %v130, %v129
  %v134 = vpack.c.b16 %v132, %v131
  %vm137 = vcmask 261120
  %v139 = vsel %vm137, %v124, 0
  %141 = vmatpush.bf16.msra.mxu0 0
  %142 = vmatpush.bf16.msra.mxu0 0
  %143 = vmatpush.bf16.msra.mxu0 0
  %144 = vmatpush.bf16.msra.mxu0 0
  %145 = vmatpush.bf16.msra.mxu0 0
  %146 = vmatpush.bf16.msra.mxu0 0
  %147 = vmatpush.bf16.msra.mxu0 %v134
  %148 = vmatpush.bf16.msra.mxu0 %v133
  %149 = vmatmul.bf16.gmra.mxu0 %v139
  %v150 = vpop.f32.mrf.mxu0
  %v151 = vadd.f32 %v118, %v150
  %v152 = vpop.f32.mrf.mxu0
  %v153 = vadd.f32 %v118, %v152
  %154 = vdwg.mxu0
  %v155 = vmax.f32 %v151, 0.0
  %v156 = vmax.f32 %v153, 0.0
  %v157 = vld [vmem:[%s7] sm:$0xff]
  %v158 = vld [vmem:[%s7 + $0x8] sm:$0xff]
  %v159 = vpack.c.bf16 %v156, %v155
  %v160 = vld [vmem:[%s5] sm:$0xf]
  %v161 = vld [vmem:[%s5 + $0x4] sm:$0xf]
  %v162 = vld [vmem:[%s5 + $0x8] sm:$0xf]
  %v163 = vld [vmem:[%s5 + $0xc] sm:$0xf]
  %v164 = vld [vmem:[%s5 + $0x10] sm:$0xf]
  %v165 = vld [vmem:[%s5 + $0x14] sm:$0xf]
  %v166 = vld [vmem:[%s5 + $0x18] sm:$0xf]
  %v167 = vld [vmem:[%s5 + $0x1c] sm:$0xf]
  %v168 = vld [vmem:[%s5 + $0x20] sm:$0xf]
  %v169 = vld [vmem:[%s5 + $0x24] sm:$0xf]
  %v170 = vld [vmem:[%s5 + $0x28] sm:$0xf]
  %v171 = vld [vmem:[%s5 + $0x2c] sm:$0xf]
  %v172 = vld [vmem:[%s5 + $0x30] sm:$0xf]
  %v173 = vld [vmem:[%s5 + $0x34] sm:$0xf]
  %v174 = vld [vmem:[%s5 + $0x38] sm:$0xf]
  %v175 = vld [vmem:[%s5 + $0x3c] sm:$0xf]
  %v192 = vunpack.c.l.b16 %v160
  %v193 = vunpack.c.l.b16 %v161
  %v194 = vunpack.c.l.b16 %v162
  %v195 = vunpack.c.l.b16 %v163
  %v196 = vunpack.c.l.b16 %v164
  %v197 = vunpack.c.l.b16 %v165
  %v198 = vunpack.c.l.b16 %v166
  %v199 = vunpack.c.l.b16 %v167
  %v200 = vunpack.c.l.b16 %v168
  %v201 = vunpack.c.l.b16 %v169
  %v202 = vunpack.c.l.b16 %v170
  %v203 = vunpack.c.l.b16 %v171
  %v204 = vunpack.c.l.b16 %v172
  %v205 = vunpack.c.l.b16 %v173
  %v206 = vunpack.c.l.b16 %v174
  %v207 = vunpack.c.l.b16 %v175
  %v208 = vpack.c.b16 %v193, %v192
  %v209 = vpack.c.b16 %v195, %v194
  %v210 = vpack.c.b16 %v197, %v196
  %v211 = vpack.c.b16 %v199, %v198
  %v212 = vpack.c.b16 %v201, %v200
  %v213 = vpack.c.b16 %v203, %v202
  %v214 = vpack.c.b16 %v205, %v204
  %v215 = vpack.c.b16 %v207, %v206
  %224 = vmatpush.bf16.msra.mxu0 %v215
  %225 = vmatpush.bf16.msra.mxu0 %v214
  %226 = vmatpush.bf16.msra.mxu0 %v213
  %227 = vmatpush.bf16.msra.mxu0 %v212
  %228 = vmatpush.bf16.msra.mxu0 %v211
  %229 = vmatpush.bf16.msra.mxu0 %v210
  %230 = vmatpush.bf16.msra.mxu0 %v209
  %231 = vmatpush.bf16.msra.mxu0 %v208
  %232 = vmatmul.bf16.gmra.mxu0 %v159
  %v233 = vpop.f32.mrf.mxu0
  %v234 = vadd.f32 0.0, %v233
  %v235 = vpop.f32.mrf.mxu0
  %v236 = vadd.f32 0.0, %v235
  %237 = vdwg.mxu0
  %v238 = vadd.f32 %v157, %v234
  %v239 = vadd.f32 %v158, %v236
  %240 = vst.msk [vmem:[%s7] sm:$0xff] %vm137, %v238
  %241 = vst.msk [vmem:[%s7 + $0x8] sm:$0xff] %vm137, %v239
  // Predicated region
  $region34: #{transformer_lm_forward.12} parent=0 // pred_check
    _
  $region35: #{transformer_lm_forward.12} parent=0 // pred_check_branch
    %243 = sbr.rel (0) target = $region37
  $region36: #{transformer_lm_forward.12} parent=0 // pred_region
    _
  $region37: #{transformer_lm_forward.12} parent=0 // pred_fallthru
    _
  // Predicated region
  $region38: #{transformer_lm_forward.12} parent=0 // pred_check
    _
  $region39: #{transformer_lm_forward.12} parent=0 // pred_check_branch
    %245 = sbr.rel (0) target = $region41
  $region40: #{transformer_lm_forward.12} parent=0 // pred_region
    _
  $region41: #{transformer_lm_forward.12} parent=0 // pred_fallthru
    _

// kernel: transformer_lm_forward.10
$region0: #{transformer_lm_forward.10}
  #allocation0 [shape = 'u32[]', space=smem, size = 0x4, offset = 0x4, fixed_abs, tag = 'smem constant byte address 0x4 - core index']
  #allocation1 [shape = 'u32[72,128]{1,0:T(1,128)}', space=vmem, size = 0x9000, scoped, tag = 'internal scratch']
  #allocation2 [shape = 'f32[4,8,1]{2,1,0:T(8,128)}', space=vmem, size = 0x4000, scoped, tag = 'scratch operand']
  #allocation3 [shape = 'f32[4,8,1]{2,1,0:T(8,128)}', space=vmem, size = 0x4000, scoped, tag = 'scratch operand']
  #allocation4 [shape = 'f32[4,8,8]{2,1,0:T(8,128)}', space=vmem, size = 0x4000, scoped, tag = 'scratch operand']
  %s0 = inlined_call_operand.vmem [shape: bf16[2,8,32], index: 0, kind: input, shape index: {}]
  %s1 = inlined_call_operand.vmem [shape: bf16[2,8,32], index: 1, kind: input, shape index: {}]
  %s2 = inlined_call_operand.vmem [shape: bf16[2,8,32], index: 2, kind: input, shape index: {}]
  %s3 = inlined_call_operand.vmem [shape: s32[2,1,8], index: 3, kind: input, shape index: {}]
  %s4 = inlined_call_operand.vmem [shape: bf16[2,8,32], index: 4, kind: output, shape index: {}]
  %s5 = sld [smem:[#allocation0]]
  $region61: #{transformer_lm_forward.10} parent=0
    _
  %s7 = ssub.s32 1, %s5
  %s8 = scalar_select 0, %s7, %s5
  loop: start=0, step=1, limit=4
  $region2: #{transformer_lm_forward.10} parent=0 // loop_pre_header
    _
  $region3: #{transformer_lm_forward.10} parent=0 // loop_header
    %s10 = sphi 0, %s14
    %p11 = scmp.ge.s32.totalorder %s10, 4
    %s17 = sphi 0, %s36
    %s18 = sphi 0, %s32
    %s19 = sphi 0, %s28
    %s20 = sphi 0, %s17
    %s21 = sphi 0, %s18
    %s22 = sphi 0, %s19
    %s23 = sphi 0, %s20
    %s24 = sphi 0, %s21
    %s25 = sphi 0, %s22
    %s41 = sphi 0, %s43
    %s44 = sphi 0, %s41
    %s45 = sphi 0, %s44
    %s61 = sphi 0, %s45
    %s69 = sphi 0, %s71
    %s72 = sphi 0, %s69
    %s73 = sphi 0, %s72
    %s89 = sphi 0, %s73
    %s97 = sphi 0, %s99
    %s100 = sphi 0, %s97
    %s101 = sphi 0, %s100
    %s117 = sphi 0, %s101
    %s125 = sphi 0, %s127
    %s128 = sphi 0, %s125
    %s129 = sphi 0, %s128
    %s145 = sphi 0, %s129
    %s153 = sphi 0, %s155
    %s156 = sphi 0, %s153
    %s157 = sphi 0, %s156
    %s173 = sphi 0, %s157
  $region4: #{transformer_lm_forward.10} parent=0 // loop_header_branch
    %13 = sbr.rel (%p11) target = $region8
  $region5: #{transformer_lm_forward.10} parent=0 // loop_body
    %s15 = ssub.s32 %s10, 1
    %s16 = ssub.s32 %s10, 2
    %s26 = sadd.s32 1, %s19
    %p27 = scmp.ge.s32.totalorder %s26, 1
    %s28 = scalar_select %p27, 0, %s26
    %s29 = sadd.s32 1, %s18
    %s30 = scalar_select %p27, %s29, %s18
    %p31 = scmp.ge.s32.totalorder %s30, 1
    %s32 = scalar_select %p31, 0, %s30
    %s33 = sadd.s32 1, %s17
    %s34 = scalar_select %p31, %s33, %s17
    %p35 = scmp.ge.s32.totalorder %s34, 2
    %s36 = scalar_select %p35, 0, %s34
    %s37 = ssub.s32 %s17, %s36
    %s38 = ssub.s32 %s18, %s32
    %s39 = sor.u32 %s37, %s38
    %p40 = scmp.eq.s32.totalorder %s39, 0
    %s42 = sadd.s32 %s41, 1
    %s43 = scalar_select %p40, %s41, %s42
    %p46 = pneg %p40
    %p47 = scmp.eq.s32.totalorder %s10, 1
    %p48 = por %p46, %p47
    %p49 = scmp.ne.s32.totalorder %s41, %s44
    %p50 = scmp.eq.s32.totalorder %s10, 0
    %p51 = por %p49, %p50
    %p52 = scmp.ne.s32.totalorder %s41, %s44
    %p53 = scmp.eq.s32.totalorder %s15, 1
    %p54 = por %p52, %p53
    %p55 = scmp.ne.s32.totalorder %s44, %s45
    %p56 = scmp.eq.s32.totalorder %s15, 0
    %p57 = por %p55, %p56
    %p58 = scmp.ne.s32.totalorder %s44, %s45
    %p59 = scmp.eq.s32.totalorder %s16, 1
    %p60 = por %p58, %p59
    %p62 = scmp.ne.s32.totalorder %s45, %s61
    %p63 = scmp.eq.s32.totalorder %s16, 0
    %p64 = por %p62, %p63
    %s65 = ssub.s32 %s17, %s36
    %s66 = ssub.s32 %s19, %s28
    %s67 = sor.u32 %s65, %s66
    %p68 = scmp.eq.s32.totalorder %s67, 0
    %s70 = sadd.s32 %s69, 1
    %s71 = scalar_select %p68, %s69, %s70
    %p74 = pneg %p68
    %p75 = scmp.eq.s32.totalorder %s10, 1
    %p76 = por %p74, %p75
    %p77 = scmp.ne.s32.totalorder %s69, %s72
    %p78 = scmp.eq.s32.totalorder %s10, 0
    %p79 = por %p77, %p78
    %p80 = scmp.ne.s32.totalorder %s69, %s72
    %p81 = scmp.eq.s32.totalorder %s15, 1
    %p82 = por %p80, %p81
    %p83 = scmp.ne.s32.totalorder %s72, %s73
    %p84 = scmp.eq.s32.totalorder %s15, 0
    %p85 = por %p83, %p84
    %p86 = scmp.ne.s32.totalorder %s72, %s73
    %p87 = scmp.eq.s32.totalorder %s16, 1
    %p88 = por %p86, %p87
    %p90 = scmp.ne.s32.totalorder %s73, %s89
    %p91 = scmp.eq.s32.totalorder %s16, 0
    %p92 = por %p90, %p91
    %s93 = ssub.s32 %s17, %s36
    %s94 = ssub.s32 %s19, %s28
    %s95 = sor.u32 %s93, %s94
    %p96 = scmp.eq.s32.totalorder %s95, 0
    %s98 = sadd.s32 %s97, 1
    %s99 = scalar_select %p96, %s97, %s98
    %p102 = pneg %p96
    %p103 = scmp.eq.s32.totalorder %s10, 1
    %p104 = por %p102, %p103
    %p105 = scmp.ne.s32.totalorder %s97, %s100
    %p106 = scmp.eq.s32.totalorder %s10, 0
    %p107 = por %p105, %p106
    %p108 = scmp.ne.s32.totalorder %s97, %s100
    %p109 = scmp.eq.s32.totalorder %s15, 1
    %p110 = por %p108, %p109
    %p111 = scmp.ne.s32.totalorder %s100, %s101
    %p112 = scmp.eq.s32.totalorder %s15, 0
    %p113 = por %p111, %p112
    %p114 = scmp.ne.s32.totalorder %s100, %s101
    %p115 = scmp.eq.s32.totalorder %s16, 1
    %p116 = por %p114, %p115
    %p118 = scmp.ne.s32.totalorder %s101, %s117
    %p119 = scmp.eq.s32.totalorder %s16, 0
    %p120 = por %p118, %p119
    %s121 = ssub.s32 %s17, %s36
    %s122 = ssub.s32 %s19, %s28
    %s123 = sor.u32 %s121, %s122
    %p124 = scmp.eq.s32.totalorder %s123, 0
    %s126 = sadd.s32 %s125, 1
    %s127 = scalar_select %p124, %s125, %s126
    %p130 = pneg %p124
    %p131 = scmp.eq.s32.totalorder %s10, 1
    %p132 = por %p130, %p131
    %p133 = scmp.ne.s32.totalorder %s125, %s128
    %p134 = scmp.eq.s32.totalorder %s10, 0
    %p135 = por %p133, %p134
    %p136 = scmp.ne.s32.totalorder %s125, %s128
    %p137 = scmp.eq.s32.totalorder %s15, 1
    %p138 = por %p136, %p137
    %p139 = scmp.ne.s32.totalorder %s128, %s129
    %p140 = scmp.eq.s32.totalorder %s15, 0
    %p141 = por %p139, %p140
    %p142 = scmp.ne.s32.totalorder %s128, %s129
    %p143 = scmp.eq.s32.totalorder %s16, 1
    %p144 = por %p142, %p143
    %p146 = scmp.ne.s32.totalorder %s129, %s145
    %p147 = scmp.eq.s32.totalorder %s16, 0
    %p148 = por %p146, %p147
    %s149 = ssub.s32 %s17, %s36
    %s150 = ssub.s32 %s18, %s32
    %s151 = sor.u32 %s149, %s150
    %p152 = scmp.eq.s32.totalorder %s151, 0
    %s154 = sadd.s32 %s153, 1
    %s155 = scalar_select %p152, %s153, %s154
    %p158 = pneg %p152
    %p159 = scmp.eq.s32.totalorder %s10, 1
    %p160 = por %p158, %p159
    %p161 = scmp.ne.s32.totalorder %s153, %s156
    %p162 = scmp.eq.s32.totalorder %s10, 0
    %p163 = por %p161, %p162
    %p164 = scmp.ne.s32.totalorder %s153, %s156
    %p165 = scmp.eq.s32.totalorder %s15, 1
    %p166 = por %p164, %p165
    %p167 = scmp.ne.s32.totalorder %s156, %s157
    %p168 = scmp.eq.s32.totalorder %s15, 0
    %p169 = por %p167, %p168
    %p170 = scmp.ne.s32.totalorder %s156, %s157
    %p171 = scmp.eq.s32.totalorder %s16, 1
    %p172 = por %p170, %p171
    %p174 = scmp.ne.s32.totalorder %s157, %s173
    %p175 = scmp.eq.s32.totalorder %s16, 0
    %p176 = por %p174, %p175
    %p177 = scmp.le.s32.totalorder 1, %s10
    %p178 = scmp.lt.s32.totalorder %s10, 3
    %p179 = pnand %p177, %p178
    %p180 = pneg %p179
    // Predicated region
    $region9: #{transformer_lm_forward.10} parent=5 // pred_check
      _
    $region10: #{transformer_lm_forward.10} parent=5 // pred_check_branch
      %182 = sbr.rel (%p179) target = $region12
    $region11: #{transformer_lm_forward.10} parent=5 // pred_region
      %s183 = ssub.s32 %s10, 1
    $region12: #{transformer_lm_forward.10} parent=5 // pred_fallthru
      _
    %p184 = scmp.lt.s32.totalorder %s10, 2
    // Predicated region
    $region13: #{transformer_lm_forward.10} parent=5 // pred_check
      %p185 = pneg %p184
    $region14: #{transformer_lm_forward.10} parent=5 // pred_check_branch
      %187 = sbr.rel (%p185) target = $region16
    $region15: #{transformer_lm_forward.10} parent=5 // pred_region
      // Predicated region
      $region17: #{transformer_lm_forward.10} parent=15 // pred_check
        %p188 = pneg %p51
      $region18: #{transformer_lm_forward.10} parent=15 // pred_check_branch
        %190 = sbr.rel (%p188) target = $region20
      $region19: #{transformer_lm_forward.10} parent=15 // pred_region
        %p191 = scmp.lt.s32.totalorder %s17, 1
        %s192 = scalar_select %p191, %s17, 1
        %p193 = scmp.lt.s32.totalorder %s18, 0
        %s194 = scalar_select %p193, %s18, 0
        %s195 = sadd.s32 %s194, %s192
        %s196 = smul.addr %s195, 4
        %s197 = scalar_lea.vmem %s0, %s196
      $region20: #{transformer_lm_forward.10} parent=15 // pred_fallthru
        _
      // Predicated region
      $region21: #{transformer_lm_forward.10} parent=15 // pred_check
        %p198 = pneg %p79
      $region22: #{transformer_lm_forward.10} parent=15 // pred_check_branch
        %200 = sbr.rel (%p198) target = $region24
      $region23: #{transformer_lm_forward.10} parent=15 // pred_region
        %p201 = scmp.lt.s32.totalorder %s17, 1
        %s202 = scalar_select %p201, %s17, 1
        %p203 = scmp.lt.s32.totalorder %s19, 0
        %s204 = scalar_select %p203, %s19, 0
        %s205 = sadd.s32 %s204, %s202
        %s206 = smul.addr %s205, 4
        %s207 = scalar_lea.vmem %s1, %s206
      $region24: #{transformer_lm_forward.10} parent=15 // pred_fallthru
        _
      // Predicated region
      $region25: #{transformer_lm_forward.10} parent=15 // pred_check
        %p208 = pneg %p107
      $region26: #{transformer_lm_forward.10} parent=15 // pred_check_branch
        %210 = sbr.rel (%p208) target = $region28
      $region27: #{transformer_lm_forward.10} parent=15 // pred_region
        %p211 = scmp.lt.s32.totalorder %s17, 1
        %s212 = scalar_select %p211, %s17, 1
        %p213 = scmp.lt.s32.totalorder %s19, 0
        %s214 = scalar_select %p213, %s19, 0
        %s215 = sadd.s32 %s214, %s212
        %s216 = smul.addr %s215, 4
        %s217 = scalar_lea.vmem %s2, %s216
      $region28: #{transformer_lm_forward.10} parent=15 // pred_fallthru
        _
      // Predicated region
      $region29: #{transformer_lm_forward.10} parent=15 // pred_check
        %p218 = pneg %p135
      $region30: #{transformer_lm_forward.10} parent=15 // pred_check_branch
        %220 = sbr.rel (%p218) target = $region32
      $region31: #{transformer_lm_forward.10} parent=15 // pred_region
        %p221 = scmp.lt.s32.totalorder %s17, 1
        %s222 = scalar_select %p221, %s17, 1
        %p223 = scmp.lt.s32.totalorder %s19, 0
        %s224 = scalar_select %p223, %s19, 0
        %s225 = sadd.s32 %s224, %s222
        %s226 = scalar_lea.vmem %s3, %s225
      $region32: #{transformer_lm_forward.10} parent=15 // pred_fallthru
        _
    $region16: #{transformer_lm_forward.10} parent=5 // pred_fallthru
      _
    %p227 = scmp.le.s32.totalorder 1, %s10
    %p228 = scmp.lt.s32.totalorder %s10, 3
    %p229 = pnand %p227, %p228
    %p230 = pneg %p229
    // Predicated region
    $region33: #{transformer_lm_forward.10} parent=5 // pred_check
      _
    $region34: #{transformer_lm_forward.10} parent=5 // pred_check_branch
      %232 = sbr.rel (%p229) target = $region36
    $region35: #{transformer_lm_forward.10} parent=5 // pred_region
      %s233 = ssub.s32 %s10, 1
      %p234 = scmp.lt.s32.totalorder %s20, 1
      %s235 = scalar_select %p234, %s20, 1
      %p236 = scmp.lt.s32.totalorder %s21, 0
      %s237 = scalar_select %p236, %s21, 0
      %s238 = sadd.s32 %s237, %s235
      %s239 = smul.addr %s238, 4
      %s240 = scalar_lea.vmem %s0, %s239
      %p241 = pneg %p57
      %p242 = pneg %p54
      %p243 = scmp.lt.s32.totalorder %s20, 1
      %s244 = scalar_select %p243, %s20, 1
      %p245 = scmp.lt.s32.totalorder %s22, 0
      %s246 = scalar_select %p245, %s22, 0
      %s247 = sadd.s32 %s246, %s244
      %s248 = smul.addr %s247, 4
      %s249 = scalar_lea.vmem %s1, %s248
      %p250 = pneg %p85
      %p251 = pneg %p82
      %p252 = scmp.lt.s32.totalorder %s20, 1
      %s253 = scalar_select %p252, %s20, 1
      %p254 = scmp.lt.s32.totalorder %s22, 0
      %s255 = scalar_select %p254, %s22, 0
      %s256 = sadd.s32 %s255, %s253
      %s257 = smul.addr %s256, 4
      %s258 = scalar_lea.vmem %s2, %s257
      %p259 = pneg %p113
      %p260 = pneg %p110
      %p261 = scmp.lt.s32.totalorder %s20, 1
      %s262 = scalar_select %p261, %s20, 1
      %p263 = scmp.lt.s32.totalorder %s22, 0
      %s264 = scalar_select %p263, %s22, 0
      %s265 = sadd.s32 %s264, %s262
      %s266 = scalar_lea.vmem %s3, %s265
      %p267 = pneg %p141
      %p268 = pneg %p138
      %p269 = pneg %p169
      %p270 = pneg %p166
      %p271 = scmp.lt.s32.totalorder %s20, 1
      %s272 = scalar_select %p271, %s20, 1
      %p273 = scmp.lt.s32.totalorder %s21, 0
      %s274 = scalar_select %p273, %s21, 0
      %s275 = sadd.s32 %s274, %s272
      %s276 = smul.addr %s275, 4
      %s277 = scalar_lea.vmem %s4, %s276
      %p278 = scmp.lt.s32.totalorder %s20, 1
      %s279 = scalar_select %p278, %s20, 1
      %p280 = scmp.lt.s32.totalorder %s21, 0
      %s281 = scalar_select %p280, %s21, 0
      %s282 = sadd.s32 %s281, %s279
      %s283 = smul.addr %s282, 4
      %s284 = scalar_lea.vmem %s0, %s283
      %p285 = scmp.lt.s32.totalorder %s20, 1
      %s286 = scalar_select %p285, %s20, 1
      %p287 = scmp.lt.s32.totalorder %s22, 0
      %s288 = scalar_select %p287, %s22, 0
      %s289 = sadd.s32 %s288, %s286
      %s290 = smul.addr %s289, 4
      %s291 = scalar_lea.vmem %s1, %s290
      %p292 = scmp.lt.s32.totalorder %s20, 1
      %s293 = scalar_select %p292, %s20, 1
      %p294 = scmp.lt.s32.totalorder %s22, 0
      %s295 = scalar_select %p294, %s22, 0
      %s296 = sadd.s32 %s295, %s293
      %s297 = smul.addr %s296, 4
      %s298 = scalar_lea.vmem %s2, %s297
      %p299 = scmp.lt.s32.totalorder %s20, 1
      %s300 = scalar_select %p299, %s20, 1
      %p301 = scmp.lt.s32.totalorder %s22, 0
      %s302 = scalar_select %p301, %s22, 0
      %s303 = sadd.s32 %s302, %s300
      %s304 = scalar_lea.vmem %s3, %s303
      %p305 = scmp.lt.s32.totalorder %s20, 1
      %s306 = scalar_select %p305, %s20, 1
      %p307 = scmp.lt.s32.totalorder %s21, 0
      %s308 = scalar_select %p307, %s21, 0
      %s309 = sadd.s32 %s308, %s306
      %s310 = smul.addr %s309, 4
      %s311 = scalar_lea.vmem %s4, %s310
      %p313 = scmp.eq.s32.totalorder %s22, 0
      // Predicated region
      $region37: #{transformer_lm_forward.10} parent=35 // pred_check
        %p314 = pneg %p313
      $region38: #{transformer_lm_forward.10} parent=35 // pred_check_branch
        %316 = sbr.rel (%p314) target = $region40
      $region39: #{transformer_lm_forward.10} parent=35 // pred_region
        %vm317 = vcmask 7168
        %318 = vst.msk [vmem:[#allocation2] sm:$0xff] %vm317, -1e+30
        %319 = vst.msk [vmem:[#allocation2 + $0x8] sm:$0xff] %vm317, -1e+30
        %320 = vst.msk [vmem:[#allocation2 + $0x10] sm:$0xff] %vm317, -1e+30
        %321 = vst.msk [vmem:[#allocation2 + $0x18] sm:$0xff] %vm317, -1e+30
        %322 = vst.msk [vmem:[#allocation3] sm:$0xff] %vm317, 0.0
        %323 = vst.msk [vmem:[#allocation3 + $0x8] sm:$0xff] %vm317, 0.0
        %324 = vst.msk [vmem:[#allocation3 + $0x10] sm:$0xff] %vm317, 0.0
        %325 = vst.msk [vmem:[#allocation3 + $0x18] sm:$0xff] %vm317, 0.0
        %vm326 = vcmask 64512
        %327 = vst.msk [vmem:[#allocation4] sm:$0xff] %vm326, 0.0
        %328 = vst.msk [vmem:[#allocation4 + $0x8] sm:$0xff] %vm326, 0.0
        %329 = vst.msk [vmem:[#allocation4 + $0x10] sm:$0xff] %vm326, 0.0
        %330 = vst.msk [vmem:[#allocation4 + $0x18] sm:$0xff] %vm326, 0.0
      $region40: #{transformer_lm_forward.10} parent=35 // pred_fallthru
        _
      %s331 = smul.u32 %s22, 8
      %s332 = smul.u32 %s21, 8
      %s333 = sadd.s32 %s332, 7
      %p334 = scmp.le.s32.totalorder %s331, %s333
      // Predicated region
      $region41: #{transformer_lm_forward.10} parent=35 // pred_check
        %p335 = pneg %p334
      $region42: #{transformer_lm_forward.10} parent=35 // pred_check_branch
        %337 = sbr.rel (%p335) target = $region44
      $region43: #{transformer_lm_forward.10} parent=35 // pred_region
        %v338 = vlaneseq
        %v339 = vshrl.u32 %v338, 7
        %v340 = vstv %s332
        %v341 = vadd.s32 %v340, %v339
        %v342 = vlaneseq
        %v343 = vand.u32 %v342, 127
        %v344 = vstv %s331
        %v345 = vadd.s32 %v344, %v343
        %v346 = vld [vmem:[%s304] sm:$0x1]
        %vm347 = vcmp.gt.s32.totalorder %v346, 0
        %vm348 = vcmp.gt.s32.totalorder %v345, %v341
        %v349 = vsel %vm347, 1, 0
        %v350 = vperm.slane %v349, 0
        %vm351 = vcmp.eq.s32.totalorder %v350, 1
        %vm352 = vmor %vm348, %vm351
        %v353 = vld [vmem:[%s284] sm:$0xf]
        %v354 = vld [vmem:[%s291] sm:$0xf]
        %v355 = vld [vmem:[%s298] sm:$0xf]
        %vm356 = vcmask 64512
        %v358 = vsel %vm356, %v353, 0
        %v361 = vsel %vm356, %v354, 0
        %363 = vmatpush.bf16.xpose.msra.mxu0 0
        %364 = vmatpush.bf16.xpose.msra.mxu0 0
        %365 = vmatpush.bf16.xpose.msra.mxu0 0
        %366 = vmatpush.bf16.xpose.msra.mxu0 0
        %367 = vmatpush.bf16.xpose.msra.mxu0 0
        %368 = vmatpush.bf16.xpose.msra.mxu0 0
        %369 = vmatpush.bf16.xpose.msra.mxu0 0
        %370 = vmatpush.bf16.xpose.msra.mxu0 %v361
        %371 = vmatmul.bf16.gmra.mxu0 %v358
        %v372 = vpop.f32.mrf.mxu0
        %v373 = vadd.f32 0.0, %v372
        %v374 = vpop.f32.mrf.mxu0
        %375 = vdwg.mxu0
        %v376 = vsel %vm352, -1e+09, %v373
        %v377 = vld [vmem:[#allocation2] sm:$0xff]
        %v378 = vsel %vm356, %v376, -inf
        %379 = vmax.xlane.f32.xlu0 %v378
        %v380 = vpop.xlane.xlu0 %379
        %v381 = vmax.f32 %v377, %v380
        %v382 = vsub.f32 %v377, %v381
        %v383 = vmul.f32 %v382, 1.442695
        %v384 = vpow.pop %v383
        %386 = vset.pattern.permute.xlu0 0
        %387 = vperm.xlu0 %386, %v381
        %v388 = vpop.permute.xlu0 %387
        %v390 = vsub.f32 %v376, %v388
        %v391 = vmul.f32 %v390, 1.442695
        %v392 = vpow.pop %v391
        %v393 = vld [vmem:[#allocation3] sm:$0xff]
        %v394 = vmul.f32 %v384, %v393
        %v395 = vsel %vm356, %v392, 0.0
        %396 = vadd.xlane.f32.xlu0 %v395
        %v397 = vpop.xlane.xlu0 %396
        %v398 = vadd.f32 %v394, %v397
        %vm399 = vcmask 7168
        %400 = vst.msk [vmem:[#allocation3] sm:$0xff] %vm399, %v398
        %v401 = vld [vmem:[#allocation4] sm:$0xff]
        %403 = vset.pattern.permute.xlu0 0
        %404 = vperm.xlu0 %403, %v384
        %v405 = vpop.permute.xlu0 %404
        %v407 = vmul.f32 %v405, %v401
        %v408 = vpack.c.bf16 %v392, %v392
        %v410 = vsel %vm356, %v408, 0
        %vm412 = vcmask 1043456
        %v414 = vsel %vm412, %v355, 0
        %416 = vmatpush.bf16.msra.mxu0 0
        %417 = vmatpush.bf16.msra.mxu0 0
        %418 = vmatpush.bf16.msra.mxu0 0
        %419 = vmatpush.bf16.msra.mxu0 0
        %420 = vmatpush.bf16.msra.mxu0 0
        %421 = vmatpush.bf16.msra.mxu0 0
        %422 = vmatpush.bf16.msra.mxu0 0
        %423 = vmatpush.bf16.msra.mxu0 %v414
        %424 = vmatmul.bf16.gmra.mxu0 %v410
        %v425 = vpop.f32.mrf.mxu0
        %v426 = vadd.f32 0.0, %v425
        %v427 = vpop.f32.mrf.mxu0
        %428 = vdwg.mxu0
        %v429 = vadd.f32 %v407, %v426
        %430 = vst.msk [vmem:[#allocation4] sm:$0xff] %vm356, %v429
        %431 = vst.msk [vmem:[#allocation2] sm:$0xff] %vm399, %v381
        %v433 = vunpack.c.l.b16 %v353
        %v434 = vpack.c.b16 %v433, %v433
        %435 = vrot.lane.b32.xlu0 %v434, 120
        %v436 = vpop.permute.xlu0 %435
        %v438 = vunpack.c.l.b16 %v354
        %v439 = vpack.c.b16 %v438, %v438
        %440 = vrot.lane.b32.xlu0 %v439, 120
        %v441 = vpop.permute.xlu0 %440
        %v443 = vsel %vm356, %v436, 0
        %v446 = vsel %vm356, %v441, 0
        %448 = vmatpush.bf16.xpose.msra.mxu0 0
        %449 = vmatpush.bf16.xpose.msra.mxu0 0
        %450 = vmatpush.bf16.xpose.msra.mxu0 0
        %451 = vmatpush.bf16.xpose.msra.mxu0 0
        %452 = vmatpush.bf16.xpose.msra.mxu0 0
        %453 = vmatpush.bf16.xpose.msra.mxu0 0
        %454 = vmatpush.bf16.xpose.msra.mxu0 0
        %455 = vmatpush.bf16.xpose.msra.mxu0 %v446
        %456 = vmatmul.bf16.gmra.mxu0 %v443
        %v457 = vpop.f32.mrf.mxu0
        %v458 = vadd.f32 0.0, %v457
        %v459 = vpop.f32.mrf.mxu0
        %460 = vdwg.mxu0
        %v461 = vsel %vm352, -1e+09, %v458
        %s462 = scalar_lea.vmem [#allocation2], 8
        %v463 = vld [vmem:[%s462] sm:$0xff]
        %v464 = vsel %vm356, %v461, -inf
        %465 = vmax.xlane.f32.xlu0 %v464
        %v466 = vpop.xlane.xlu0 %465
        %v467 = vmax.f32 %v463, %v466
        %v468 = vsub.f32 %v463, %v467
        %v469 = vmul.f32 %v468, 1.442695
        %v470 = vpow.pop %v469
        %472 = vset.pattern.permute.xlu0 0
        %473 = vperm.xlu0 %472, %v467
        %v474 = vpop.permute.xlu0 %473
        %v476 = vsub.f32 %v461, %v474
        %v477 = vmul.f32 %v476, 1.442695
        %v478 = vpow.pop %v477
        %s479 = scalar_lea.vmem [#allocation3], 8
        %v480 = vld [vmem:[%s479] sm:$0xff]
        %v481 = vmul.f32 %v470, %v480
        %v482 = vsel %vm356, %v478, 0.0
        %483 = vadd.xlane.f32.xlu0 %v482
        %v484 = vpop.xlane.xlu0 %483
        %v485 = vadd.f32 %v481, %v484
        %486 = vst.msk [vmem:[%s479] sm:$0xff] %vm399, %v485
        %s487 = scalar_lea.vmem [#allocation4], 8
        %v488 = vld [vmem:[%s487] sm:$0xff]
        %490 = vset.pattern.permute.xlu0 0
        %491 = vperm.xlu0 %490, %v470
        %v492 = vpop.permute.xlu0 %491
        %v494 = vmul.f32 %v492, %v488
        %v495 = vpack.c.bf16 %v478, %v478
        %v497 = vunpack.c.l.b16 %v355
        %v498 = vpack.c.b16 %v497, %v497
        %499 = vrot.lane.b32.xlu0 %v498, 120
        %v500 = vpop.permute.xlu0 %499
        %v502 = vsel %vm356, %v495, 0
        %v505 = vsel %vm412, %v500, 0
        %507 = vmatpush.bf16.msra.mxu0 0
        %508 = vmatpush.bf16.msra.mxu0 0
        %509 = vmatpush.bf16.msra.mxu0 0
        %510 = vmatpush.bf16.msra.mxu0 0
        %511 = vmatpush.bf16.msra.mxu0 0
        %512 = vmatpush.bf16.msra.mxu0 0
        %513 = vmatpush.bf16.msra.mxu0 0
        %514 = vmatpush.bf16.msra.mxu0 %v505
        %515 = vmatmul.bf16.gmra.mxu0 %v502
        %v516 = vpop.f32.mrf.mxu0
        %v517 = vadd.f32 0.0, %v516
        %v518 = vpop.f32.mrf.mxu0
        %519 = vdwg.mxu0
        %v520 = vadd.f32 %v494, %v517
        %521 = vst.msk [vmem:[%s487] sm:$0xff] %vm356, %v520
        %522 = vst.msk [vmem:[%s462] sm:$0xff] %vm399, %v467
        %523 = vrot.lane.b32.xlu0 %v434, 112
        %v524 = vpop.permute.xlu0 %523
        %525 = vrot.lane.b32.xlu0 %v439, 112
        %v526 = vpop.permute.xlu0 %525
        %v528 = vsel %vm356, %v524, 0
        %v531 = vsel %vm356, %v526, 0
        %533 = vmatpush.bf16.xpose.msra.mxu0 0
        %534 = vmatpush.bf16.xpose.msra.mxu0 0
        %535 = vmatpush.bf16.xpose.msra.mxu0 0
        %536 = vmatpush.bf16.xpose.msra.mxu0 0
        %537 = vmatpush.bf16.xpose.msra.mxu0 0
        %538 = vmatpush.bf16.xpose.msra.mxu0 0
        %539 = vmatpush.bf16.xpose.msra.mxu0 0
        %540 = vmatpush.bf16.xpose.msra.mxu0 %v531
        %541 = vmatmul.bf16.gmra.mxu0 %v528
        %v542 = vpop.f32.mrf.mxu0
        %v543 = vadd.f32 0.0, %v542
        %v544 = vpop.f32.mrf.mxu0
        %545 = vdwg.mxu0
        %v546 = vsel %vm352, -1e+09, %v543
        %s547 = scalar_lea.vmem [#allocation2], 16
        %v548 = vld [vmem:[%s547] sm:$0xff]
        %v549 = vsel %vm356, %v546, -inf
        %550 = vmax.xlane.f32.xlu0 %v549
        %v551 = vpop.xlane.xlu0 %550
        %v552 = vmax.f32 %v548, %v551
        %v553 = vsub.f32 %v548, %v552
        %v554 = vmul.f32 %v553, 1.442695
        %v555 = vpow.pop %v554
        %557 = vset.pattern.permute.xlu0 0
        %558 = vperm.xlu0 %557, %v552
        %v559 = vpop.permute.xlu0 %558
        %v561 = vsub.f32 %v546, %v559
        %v562 = vmul.f32 %v561, 1.442695
        %v563 = vpow.pop %v562
        %s564 = scalar_lea.vmem [#allocation3], 16
        %v565 = vld [vmem:[%s564] sm:$0xff]
        %v566 = vmul.f32 %v555, %v565
        %v567 = vsel %vm356, %v563, 0.0
        %568 = vadd.xlane.f32.xlu0 %v567
        %v569 = vpop.xlane.xlu0 %568
        %v570 = vadd.f32 %v566, %v569
        %571 = vst.msk [vmem:[%s564] sm:$0xff] %vm399, %v570
        %s572 = scalar_lea.vmem [#allocation4], 16
        %v573 = vld [vmem:[%s572] sm:$0xff]
        %575 = vset.pattern.permute.xlu0 0
        %576 = vperm.xlu0 %575, %v555
        %v577 = vpop.permute.xlu0 %576
        %v579 = vmul.f32 %v577, %v573
        %v580 = vpack.c.bf16 %v563, %v563
        %581 = vrot.lane.b32.xlu0 %v498, 112
        %v582 = vpop.permute.xlu0 %581
        %v584 = vsel %vm356, %v580, 0
        %v587 = vsel %vm412, %v582, 0
        %589 = vmatpush.bf16.msra.mxu0 0
        %590 = vmatpush.bf16.msra.mxu0 0
        %591 = vmatpush.bf16.msra.mxu0 0
        %592 = vmatpush.bf16.msra.mxu0 0
        %593 = vmatpush.bf16.msra.mxu0 0
        %594 = vmatpush.bf16.msra.mxu0 0
        %595 = vmatpush.bf16.msra.mxu0 0
        %596 = vmatpush.bf16.msra.mxu0 %v587
        %597 = vmatmul.bf16.gmra.mxu0 %v584
        %v598 = vpop.f32.mrf.mxu0
        %v599 = vadd.f32 0.0, %v598
        %v600 = vpop.f32.mrf.mxu0
        %601 = vdwg.mxu0
        %v602 = vadd.f32 %v579, %v599
        %603 = vst.msk [vmem:[%s572] sm:$0xff] %vm356, %v602
        %604 = vst.msk [vmem:[%s547] sm:$0xff] %vm399, %v552
        %605 = vrot.lane.b32.xlu0 %v434, 104
        %v606 = vpop.permute.xlu0 %605
        %607 = vrot.lane.b32.xlu0 %v439, 104
        %v608 = vpop.permute.xlu0 %607
        %v610 = vsel %vm356, %v606, 0
        %v613 = vsel %vm356, %v608, 0
        %615 = vmatpush.bf16.xpose.msra.mxu0 0
        %616 = vmatpush.bf16.xpose.msra.mxu0 0
        %617 = vmatpush.bf16.xpose.msra.mxu0 0
        %618 = vmatpush.bf16.xpose.msra.mxu0 0
        %619 = vmatpush.bf16.xpose.msra.mxu0 0
        %620 = vmatpush.bf16.xpose.msra.mxu0 0
        %621 = vmatpush.bf16.xpose.msra.mxu0 0
        %622 = vmatpush.bf16.xpose.msra.mxu0 %v613
        %623 = vmatmul.bf16.gmra.mxu0 %v610
        %v624 = vpop.f32.mrf.mxu0
        %v625 = vadd.f32 0.0, %v624
        %v626 = vpop.f32.mrf.mxu0
        %627 = vdwg.mxu0
        %v628 = vsel %vm352, -1e+09, %v625
        %s629 = scalar_lea.vmem [#allocation2], 24
        %v630 = vld [vmem:[%s629] sm:$0xff]
        %v631 = vsel %vm356, %v628, -inf
        %632 = vmax.xlane.f32.xlu0 %v631
        %v633 = vpop.xlane.xlu0 %632
        %v634 = vmax.f32 %v630, %v633
        %v635 = vsub.f32 %v630, %v634
        %v636 = vmul.f32 %v635, 1.442695
        %v637 = vpow.pop %v636
        %639 = vset.pattern.permute.xlu0 0
        %640 = vperm.xlu0 %639, %v634
        %v641 = vpop.permute.xlu0 %640
        %v643 = vsub.f32 %v628, %v641
        %v644 = vmul.f32 %v643, 1.442695
        %v645 = vpow.pop %v644
        %s646 = scalar_lea.vmem [#allocation3], 24
        %v647 = vld [vmem:[%s646] sm:$0xff]
        %v648 = vmul.f32 %v637, %v647
        %v649 = vsel %vm356, %v645, 0.0
        %650 = vadd.xlane.f32.xlu0 %v649
        %v651 = vpop.xlane.xlu0 %650
        %v652 = vadd.f32 %v648, %v651
        %653 = vst.msk [vmem:[%s646] sm:$0xff] %vm399, %v652
        %s654 = scalar_lea.vmem [#allocation4], 24
        %v655 = vld [vmem:[%s654] sm:$0xff]
        %657 = vset.pattern.permute.xlu0 0
        %658 = vperm.xlu0 %657, %v637
        %v659 = vpop.permute.xlu0 %658
        %v661 = vmul.f32 %v659, %v655
        %v662 = vpack.c.bf16 %v645, %v645
        %663 = vrot.lane.b32.xlu0 %v498, 104
        %v664 = vpop.permute.xlu0 %663
        %v666 = vsel %vm356, %v662, 0
        %v669 = vsel %vm412, %v664, 0
        %671 = vmatpush.bf16.msra.mxu0 0
        %672 = vmatpush.bf16.msra.mxu0 0
        %673 = vmatpush.bf16.msra.mxu0 0
        %674 = vmatpush.bf16.msra.mxu0 0
        %675 = vmatpush.bf16.msra.mxu0 0
        %676 = vmatpush.bf16.msra.mxu0 0
        %677 = vmatpush.bf16.msra.mxu0 0
        %678 = vmatpush.bf16.msra.mxu0 %v669
        %679 = vmatmul.bf16.gmra.mxu0 %v666
        %v680 = vpop.f32.mrf.mxu0
        %v681 = vadd.f32 0.0, %v680
        %v682 = vpop.f32.mrf.mxu0
        %683 = vdwg.mxu0
        %v684 = vadd.f32 %v661, %v681
        %685 = vst.msk [vmem:[%s654] sm:$0xff] %vm356, %v684
        %686 = vst.msk [vmem:[%s629] sm:$0xff] %vm399, %v634
      $region44: #{transformer_lm_forward.10} parent=35 // pred_fallthru
        _
      // Predicated region
      $region45: #{transformer_lm_forward.10} parent=35 // pred_check
        %p687 = pneg %p313
      $region46: #{transformer_lm_forward.10} parent=35 // pred_check_branch
        %689 = sbr.rel (%p687) target = $region48
      $region47: #{transformer_lm_forward.10} parent=35 // pred_region
        %v690 = vld [vmem:[#allocation3] sm:$0xff]
        %v691 = vrcp.pop %v690
        %v692 = vld [vmem:[#allocation4] sm:$0xff]
        %694 = vset.pattern.permute.xlu0 0
        %695 = vperm.xlu0 %694, %v691
        %v696 = vpop.permute.xlu0 %695
        %v698 = vmul.f32 %v692, %v696
        %s699 = scalar_lea.vmem [#allocation3], 8
        %v700 = vld [vmem:[%s699] sm:$0xff]
        %v701 = vrcp.pop %v700
        %s702 = scalar_lea.vmem [#allocation4], 8
        %v703 = vld [vmem:[%s702] sm:$0xff]
        %705 = vset.pattern.permute.xlu0 0
        %706 = vperm.xlu0 %705, %v701
        %v707 = vpop.permute.xlu0 %706
        %v709 = vmul.f32 %v703, %v707
        %s710 = scalar_lea.vmem [#allocation3], 16
        %v711 = vld [vmem:[%s710] sm:$0xff]
        %v712 = vrcp.pop %v711
        %s713 = scalar_lea.vmem [#allocation4], 16
        %v714 = vld [vmem:[%s713] sm:$0xff]
        %716 = vset.pattern.permute.xlu0 0
        %717 = vperm.xlu0 %716, %v712
        %v718 = vpop.permute.xlu0 %717
        %v720 = vmul.f32 %v714, %v718
        %s721 = scalar_lea.vmem [#allocation3], 24
        %v722 = vld [vmem:[%s721] sm:$0xff]
        %v723 = vrcp.pop %v722
        %s724 = scalar_lea.vmem [#allocation4], 24
        %v725 = vld [vmem:[%s724] sm:$0xff]
        %727 = vset.pattern.permute.xlu0 0
        %728 = vperm.xlu0 %727, %v723
        %v729 = vpop.permute.xlu0 %728
        %v731 = vmul.f32 %v725, %v729
        %733 = vrot.lane.b32.xlu0 %v709, 8
        %v734 = vpop.permute.xlu0 %733
        %737 = vrot.lane.b32.xlu0 %v720, 16
        %v738 = vpop.permute.xlu0 %737
        %741 = vrot.lane.b32.xlu0 %v731, 24
        %v742 = vpop.permute.xlu0 %741
        %vm744 = vcmask 64512
        %v745 = vsel %vm744, %v698, %v734
        %vm746 = vcmask 130048
        %v747 = vsel %vm746, %v745, %v738
        %vm748 = vcmask 195584
        %v749 = vsel %vm748, %v747, %v742
        %v750 = vpack.c.bf16 %v749, %v749
        %vm751 = vcmask 257024
        %752 = vst.msk [vmem:[%s311] sm:$0xf] %vm751, %v750
      $region48: #{transformer_lm_forward.10} parent=35 // pred_fallthru
        _
      %p753 = scmp.lt.s32.totalorder %s20, 1
      %s754 = scalar_select %p753, %s20, 1
      %p755 = scmp.lt.s32.totalorder %s21, 0
      %s756 = scalar_select %p755, %s21, 0
      %s757 = sadd.s32 %s756, %s754
      %s758 = smul.addr %s757, 4
      %s759 = scalar_lea.vmem %s4, %s758
      // Predicated region
      $region49: #{transformer_lm_forward.10} parent=35 // pred_check
        %p760 = pneg %p166
      $region50: #{transformer_lm_forward.10} parent=35 // pred_check_branch
        %762 = sbr.rel (%p760) target = $region52
      $region51: #{transformer_lm_forward.10} parent=35 // pred_region
        _
      $region52: #{transformer_lm_forward.10} parent=35 // pred_fallthru
        _
    $region36: #{transformer_lm_forward.10} parent=5 // pred_fallthru
      _
    %p763 = scmp.le.s32.totalorder 2, %s10
    // Predicated region
    $region53: #{transformer_lm_forward.10} parent=5 // pred_check
      %p764 = pneg %p763
    $region54: #{transformer_lm_forward.10} parent=5 // pred_check_branch
      %766 = sbr.rel (%p764) target = $region56
    $region55: #{transformer_lm_forward.10} parent=5 // pred_region
      %s767 = ssub.s32 %s10, 2
      // Predicated region
      $region57: #{transformer_lm_forward.10} parent=55 // pred_check
        %p768 = pneg %p172
      $region58: #{transformer_lm_forward.10} parent=55 // pred_check_branch
        %770 = sbr.rel (%p768) target = $region60
      $region59: #{transformer_lm_forward.10} parent=55 // pred_region
        %p771 = scmp.lt.s32.totalorder %s23, 1
        %s772 = scalar_select %p771, %s23, 1
        %p773 = scmp.lt.s32.totalorder %s24, 0
        %s774 = scalar_select %p773, %s24, 0
        %s775 = sadd.s32 %s774, %s772
        %s776 = smul.addr %s775, 4
        %s777 = scalar_lea.vmem %s4, %s776
      $region60: #{transformer_lm_forward.10} parent=55 // pred_fallthru
        _
    $region56: #{transformer_lm_forward.10} parent=5 // pred_fallthru
      _
  $region6: #{transformer_lm_forward.10} parent=0 // loop_footer
    %s14 = sadd.s32 1, %s10
  $region7: #{transformer_lm_forward.10} parent=0 // loop_footer_branch
    %9 = sbr.rel target = $region3
  $region8: #{transformer_lm_forward.10} parent=0 // loop_exit
    _

// kernel: transformer_lm_forward.17
$region0: #{transformer_lm_forward.17}
  #allocation0 [shape = 'u32[]', space=smem, size = 0x4, offset = 0x4, fixed_abs, tag = 'smem constant byte address 0x4 - core index']
  #allocation1 [shape = 'u32[72,128]{1,0:T(1,128)}', space=vmem, size = 0x9000, scoped, tag = 'internal scratch']
  %s0 = inlined_call_operand.vmem [shape: f32[16,32], index: 0, kind: input, shape index: {}]
  %s1 = inlined_call_operand.vmem [shape: bf16[32,128], index: 1, kind: input, shape index: {}]
  %s2 = inlined_call_operand.vmem [shape: f32[1,128], index: 2, kind: input, shape index: {}]
  %s3 = inlined_call_operand.vmem [shape: f32[16,128], index: 3, kind: output, shape index: {}]
  %s4 = sld [smem:[#allocation0]]
  $region26: #{transformer_lm_forward.17} parent=0
    _
  %s6 = ssub.s32 1, %s4
  %s7 = scalar_select 0, %s6, %s4
  // Predicated region
  $region2: #{transformer_lm_forward.17} parent=0 // pred_check
    _
  $region3: #{transformer_lm_forward.17} parent=0 // pred_check_branch
    %9 = sbr.rel (0) target = $region5
  $region4: #{transformer_lm_forward.17} parent=0 // pred_region
    _
  $region5: #{transformer_lm_forward.17} parent=0 // pred_fallthru
    _
  // Predicated region
  $region6: #{transformer_lm_forward.17} parent=0 // pred_check
    _
  $region7: #{transformer_lm_forward.17} parent=0 // pred_check_branch
    %11 = sbr.rel (0) target = $region9
  $region8: #{transformer_lm_forward.17} parent=0 // pred_region
    _
  $region9: #{transformer_lm_forward.17} parent=0 // pred_fallthru
    _
  // Predicated region
  $region10: #{transformer_lm_forward.17} parent=0 // pred_check
    _
  $region11: #{transformer_lm_forward.17} parent=0 // pred_check_branch
    %13 = sbr.rel (0) target = $region13
  $region12: #{transformer_lm_forward.17} parent=0 // pred_region
    _
  $region13: #{transformer_lm_forward.17} parent=0 // pred_fallthru
    _
  %p15 = scmp.eq.s32.totalorder 0, 0
  // Predicated region
  $region14: #{transformer_lm_forward.17} parent=0 // pred_check
    %p16 = pneg %p15
  $region15: #{transformer_lm_forward.17} parent=0 // pred_check_branch
    %18 = sbr.rel (%p16) target = $region17
  $region16: #{transformer_lm_forward.17} parent=0 // pred_region
    %v19 = vld [vmem:[%s2] sm:$0x1]
    %v21 = vperm.slane %v19, 0
    %23 = vst [vmem:[%s3] sm:$0xff] %v21
    %24 = vst [vmem:[%s3 + $0x8] sm:$0xff] %v21
  $region17: #{transformer_lm_forward.17} parent=0 // pred_fallthru
    _
  %v25 = vld [vmem:[%s0] sm:$0xff]
  %v26 = vld [vmem:[%s0 + $0x8] sm:$0xff]
  %v27 = vpack.c.bf16 %v26, %v25
  %v28 = vld [vmem:[%s1] sm:$0xf]
  %v29 = vld [vmem:[%s1 + $0x4] sm:$0xf]
  %v30 = vld [vmem:[%s1 + $0x8] sm:$0xf]
  %v31 = vld [vmem:[%s1 + $0xc] sm:$0xf]
  %v32 = vld [vmem:[%s3] sm:$0xff]
  %v33 = vld [vmem:[%s3 + $0x8] sm:$0xff]
  %v38 = vunpack.c.l.b16 %v28
  %v39 = vunpack.c.l.b16 %v29
  %v40 = vunpack.c.l.b16 %v30
  %v41 = vunpack.c.l.b16 %v31
  %v42 = vpack.c.b16 %v39, %v38
  %v43 = vpack.c.b16 %v41, %v40
  %vm46 = vcmask 261120
  %v48 = vsel %vm46, %v27, 0
  %50 = vmatpush.bf16.msra.mxu0 0
  %51 = vmatpush.bf16.msra.mxu0 0
  %52 = vmatpush.bf16.msra.mxu0 0
  %53 = vmatpush.bf16.msra.mxu0 0
  %54 = vmatpush.bf16.msra.mxu0 0
  %55 = vmatpush.bf16.msra.mxu0 0
  %56 = vmatpush.bf16.msra.mxu0 %v43
  %57 = vmatpush.bf16.msra.mxu0 %v42
  %58 = vmatmul.bf16.gmra.mxu0 %v48
  %v59 = vpop.f32.mrf.mxu0
  %v60 = vadd.f32 0.0, %v59
  %v61 = vpop.f32.mrf.mxu0
  %v62 = vadd.f32 0.0, %v61
  %63 = vdwg.mxu0
  %v64 = vadd.f32 %v32, %v60
  %v65 = vadd.f32 %v33, %v62
  %66 = vst [vmem:[%s3] sm:$0xff] %v64
  %67 = vst [vmem:[%s3 + $0x8] sm:$0xff] %v65
  // Predicated region
  $region18: #{transformer_lm_forward.17} parent=0 // pred_check
    _
  $region19: #{transformer_lm_forward.17} parent=0 // pred_check_branch
    %69 = sbr.rel (0) target = $region21
  $region20: #{transformer_lm_forward.17} parent=0 // pred_region
    _
  $region21: #{transformer_lm_forward.17} parent=0 // pred_fallthru
    _
  // Predicated region
  $region22: #{transformer_lm_forward.17} parent=0 // pred_check
    _
  $region23: #{transformer_lm_forward.17} parent=0 // pred_check_branch
    %71 = sbr.rel (0) target = $region25
  $region24: #{transformer_lm_forward.17} parent=0 // pred_region
    _
  $region25: #{transformer_lm_forward.17} parent=0 // pred_fallthru
    _

</llo_original>
